<compile_context>
chip_gen: v7x
topology: tpu7x:2x2x1
jax: 0.10.0
libtpu: 0.0.40
codegen_flags: <defaults>
</compile_context>

<pallas_src>
import jax
import jax.numpy as jnp
from jax import lax
from jax.experimental import pallas as pl
from jax.experimental.pallas import tpu as pltpu
import numpy as np


def _round_up(x, m):
    return ((x + m - 1) // m) * m


def _sigmoid_tanh(x):
    # tanh-form sigmoid: a single EUP push plus cheap VALU mul/add (vs exp + divide).
    return 0.5 * jnp.tanh(0.5 * x) + 0.5


def lstm_fc_kernel(ids_ref, xgt_ref, whh_ref, wfc_ref, bfc_ref, out_ref, xg_sc):
    """ids_ref: [T*Bp, 1] int32  time-major token ids, batch padded to Bp
       xgt_ref: [Vt, 4H]  f32    precomputed emb @ W_ih.T + (b_ih + b_hh) table
       whh_ref: [H, 4H]   bf16   (= weight_hh_l0.T, PyTorch gate order i,f,g,o)
       wfc_ref: [H, Vp]   bf16   (= fc.weight.T, vocab padded to Vp=128 lanes)
       bfc_ref: [1, Vp]   f32    (= fc.bias, padded)
       out_ref: [Bp, Vp]  f32
       xg_sc:   [T*Bp,4H] f32    VMEM scratch: per-(step,row) gate pre-activations."""
    Bp = out_ref.shape[0]
    H = whh_ref.shape[0]
    TBp = ids_ref.shape[0]
    T = TBp // Bp
    Vt = xgt_ref.shape[0]

    # Folded embedding + input projection + bias: one-hot(ids) @ table.
    # One tiny MXU call covering every (timestep, batch row); f32 x f32, so table
    # rows are selected (essentially) exactly.
    ids = ids_ref[...]                                                   # [T*Bp, 1]
    onehot = (ids == lax.broadcasted_iota(jnp.int32, (TBp, Vt), 1)
              ).astype(jnp.float32)                                      # [T*Bp, Vt]
    xg_sc[...] = jnp.dot(onehot, xgt_ref[...],
                         preferred_element_type=jnp.float32)             # [T*Bp, 4H]

    def step(t, carry):
        h, c = carry                                       # f32 [Bp, H] vreg carries
        row = pl.multiple_of(t * Bp, Bp)
        xg_t = xg_sc[pl.ds(row, Bp), :]                    # [Bp, 4H] f32
        gates = xg_t + jnp.dot(h.astype(jnp.bfloat16), whh_ref[...],
                               preferred_element_type=jnp.float32)
        # PyTorch gate order i, f, g, o — o last is the best MRF pop order (v5e/v6e).
        i_g = _sigmoid_tanh(gates[:, 0:H])
        f_g = _sigmoid_tanh(gates[:, H:2 * H])
        g_g = jnp.tanh(gates[:, 2 * H:3 * H])
        o_g = _sigmoid_tanh(gates[:, 3 * H:4 * H])
        c = f_g * c + i_g * g_g
        h = o_g * jnp.tanh(c)
        return h, c

    h0 = jnp.zeros((Bp, H), jnp.float32)
    c0 = jnp.zeros((Bp, H), jnp.float32)
    h, _ = lax.fori_loop(0, T, step, (h0, c0), unroll=True)

    # fc(lstm_out[:, -1, :]) == fc(h_T), computed on the vreg-resident carry, bias fused.
    out_ref[...] = (jnp.dot(h.astype(jnp.bfloat16), wfc_ref[...],
                            preferred_element_type=jnp.float32)
                    + bfc_ref[...]).astype(out_ref.dtype)


def name_generator_forward(x_ids, params):
    """x_ids: int32 [B, T] character indices. Returns logits [B, vocab_size]."""
    B, T = x_ids.shape
    H = params["w_hh_t"].shape[0]
    Vp = params["w_fc_t"].shape[1]
    V = params["vocab_size"]
    Bp = max(8, _round_up(B, 8))

    # Only remaining glue: tiny time-major, batch-padded id tensor.
    # (Pad id 0 rows run real math; their outputs are sliced away below.)
    ids_tm = jnp.pad(x_ids.T.astype(jnp.int32), ((0, 0), (0, Bp - B)))   # [T, Bp]
    ids_flat = ids_tm.reshape(T * Bp, 1)

    vmem = pl.BlockSpec(memory_space=pltpu.MemorySpace.VMEM)
    out_padded = pl.pallas_call(
        lstm_fc_kernel,
        out_shape=jax.ShapeDtypeStruct((Bp, Vp), jnp.float32),
        in_specs=[vmem] * 5,
        out_specs=vmem,
        scratch_shapes=[pltpu.VMEM((T * Bp, 4 * H), jnp.float32)],
    )(ids_flat, params["xg_tab"], params["w_hh_t"], params["w_fc_t"],
      params["b_fc_p"])
    return out_padded[:B, :V]


def init_params(key, vocab_size, embedding_dim, hidden_dim):
    """Deterministic synthetic params matching nn.Embedding / nn.LSTM / nn.Linear shapes,
    pre-transposed / padded / cast / table-folded for the kernel.  Raw (unfused)
    weights are kept for the independent reference."""
    assert hidden_dim % 128 == 0, "gate slices / lane layout assume H % 128 == 0"
    ks = jax.random.split(key, 7)
    s = 1.0 / np.sqrt(hidden_dim)
    emb = jax.random.normal(ks[0], (vocab_size, embedding_dim), jnp.float32)
    w_ih = jax.random.uniform(ks[1], (4 * hidden_dim, embedding_dim), jnp.float32, -s, s)
    w_hh = jax.random.uniform(ks[2], (4 * hidden_dim, hidden_dim), jnp.float32, -s, s)
    b_ih = jax.random.uniform(ks[3], (4 * hidden_dim,), jnp.float32, -s, s)
    b_hh = jax.random.uniform(ks[4], (4 * hidden_dim,), jnp.float32, -s, s)
    w_fc = jax.random.uniform(ks[5], (vocab_size, hidden_dim), jnp.float32, -s, s)
    b_fc = jax.random.uniform(ks[6], (vocab_size,), jnp.float32, -s, s)

    # Fold embedding @ W_ih.T + (b_ih + b_hh) into one table (same bf16-weight /
    # f32-accumulation math the kernel previously did per call, now done once).
    xg_tab = (jnp.dot(emb.astype(jnp.bfloat16), w_ih.T.astype(jnp.bfloat16),
                      preferred_element_type=jnp.float32)
              + (b_ih + b_hh)[None, :])                         # [V, 4H] f32
    Vt = _round_up(vocab_size, 8)                               # sublane-padded table
    xg_tab_p = jnp.zeros((Vt, 4 * hidden_dim), jnp.float32).at[:vocab_size].set(xg_tab)

    Vp = _round_up(vocab_size, 128)                             # lane-dense output
    w_fc_t = jnp.zeros((hidden_dim, Vp), jnp.float32).at[:, :vocab_size].set(w_fc.T)
    b_fc_p = jnp.zeros((1, Vp), jnp.float32).at[0, :vocab_size].set(b_fc)

    return {
        # kernel inputs
        "xg_tab": xg_tab_p,                                     # [Vt, 4H] f32
        "w_hh_t": w_hh.T.astype(jnp.bfloat16),                  # [H, 4H]  bf16
        "w_fc_t": w_fc_t.astype(jnp.bfloat16),                  # [H, Vp]  bf16
        "b_fc_p": b_fc_p,                                       # [1, Vp]  f32
        "vocab_size": vocab_size,
        # reference-only (unfused) params
        "emb": emb,
        "w_ih_t": w_ih.T.astype(jnp.bfloat16),                  # [E, 4H]  bf16
        "w_hh_t_ref": w_hh.T.astype(jnp.bfloat16),
        "b": (b_ih + b_hh).reshape(1, -1),                      # [1, 4H]  f32
        "w_fc": w_fc, "b_fc": b_fc,
    }


def reference_forward(x_ids, params):
    """Pure-JAX reference mirroring PyTorch LSTM semantics (gate order i,f,g,o),
    computed UNFUSED (embedding gather + separate input projection) with the same
    bf16-weight / f32-accumulation matmul math as the kernel."""
    emb = params["emb"]
    w_ih_t = params["w_ih_t"]
    w_hh_t = params["w_hh_t_ref"]
    b = params["b"]
    w_fc, b_fc = params["w_fc"], params["b_fc"]
    B, T = x_ids.shape
    H = w_hh_t.shape[0]
    x = jnp.take(emb, x_ids, axis=0).astype(jnp.bfloat16)       # [B, T, E]
    h = jnp.zeros((B, H), jnp.float32)
    c = jnp.zeros((B, H), jnp.float32)
    for t in range(T):
        gates = (jnp.dot(x[:, t, :], w_ih_t, preferred_element_type=jnp.float32)
                 + jnp.dot(h.astype(jnp.bfloat16), w_hh_t,
                           preferred_element_type=jnp.float32)
                 + b[0])
        i = jax.nn.sigmoid(gates[:, 0:H])
        f = jax.nn.sigmoid(gates[:, H:2 * H])
        g = jnp.tanh(gates[:, 2 * H:3 * H])
        o = jax.nn.sigmoid(gates[:, 3 * H:4 * H])
        c = f * c + i * g
        h = o * jnp.tanh(c)
    return (jnp.dot(h.astype(jnp.bfloat16), w_fc.T.astype(jnp.bfloat16),
                    preferred_element_type=jnp.float32) + b_fc[None, :])


if __name__ == "__main__":
    VOCAB, EMB, HID = 27, 24, 128   # makemore-style vocab; module defaults
    B, T = 2, 8

    key = jax.random.PRNGKey(0)
    pkey, xkey = jax.random.split(key)
    params = init_params(pkey, VOCAB, EMB, HID)
    x_ids = jax.random.randint(xkey, (B, T), 0, VOCAB, dtype=jnp.int32)

    out = jax.block_until_ready(name_generator_forward(x_ids, params))
    ref = reference_forward(x_ids, params)

    assert out.shape == (B, VOCAB)
    # Kernel uses the folded table + tanh-form sigmoid; reference is the unfused
    # exp-form path, so allow ~1e-3 (logit magnitudes are O(0.1-1)).
    np.testing.assert_allclose(np.asarray(out), np.asarray(ref), rtol=1e-3, atol=1e-3)
    print("KERNEL_OK")
</pallas_src>

<mosaic_0001>
module attributes {stable_mosaic.version = 11 : i64} {
  func.func @lstm_fc_kernel(%arg0: memref<64x1xi32, #tpu.memory_space<vmem>>, %arg1: memref<32x512xf32, #tpu.memory_space<vmem>>, %arg2: memref<128x512xbf16, #tpu.memory_space<vmem>>, %arg3: memref<128x128xbf16, #tpu.memory_space<vmem>>, %arg4: memref<1x128xf32, #tpu.memory_space<vmem>>, %arg5: memref<8x128xf32, #tpu.memory_space<vmem>>, %arg6: memref<64x512xf32, #tpu.memory_space<vmem>>) attributes {dimension_semantics = [], scalar_prefetch = 0 : i64, scratch_operands = 1 : i64, tpu.core_type = #tpu.core_type<tc>} {
    %c0 = arith.constant 0 : index
    %c0_0 = arith.constant 0 : index
    %0 = vector.load %arg0[%c0, %c0_0] : memref<64x1xi32, #tpu.memory_space<vmem>>, vector<64x1xi32>
    %1 = tpu.iota {dimensions = array<i32: 1>} : vector<64x32xi32>
    %2 = vector.broadcast %0 : vector<64x1xi32> to vector<64x32xi32>
    %3 = arith.cmpi eq, %2, %1 : vector<64x32xi32>
    %4 = arith.extui %3 : vector<64x32xi1> to vector<64x32xi32>
    %5 = arith.sitofp %4 : vector<64x32xi32> to vector<64x32xf32>
    %c0_1 = arith.constant 0 : index
    %c0_2 = arith.constant 0 : index
    %6 = vector.load %arg1[%c0_1, %c0_2] : memref<32x512xf32, #tpu.memory_space<vmem>>, vector<32x512xf32>
    %cst = arith.constant dense<0.000000e+00> : vector<64x512xf32>
    %7 = tpu.matmul %5, %6, %cst {dimension_numbers = #tpu.dot_dimension_numbers<[1], [0], [0], [1], [0, 0, 1, 1], [], []>} : vector<64x32xf32>, vector<32x512xf32>, vector<64x512xf32> -> vector<64x512xf32>
    %c0_3 = arith.constant 0 : index
    %c0_4 = arith.constant 0 : index
    %8 = vector.load %arg6[%c0_3, %c0_4] : memref<64x512xf32, #tpu.memory_space<vmem>>, vector<64x512xf32>
    tpu.vector_store %arg6[%c0_3, %c0_4], %7 {strides = array<i32>} : memref<64x512xf32, #tpu.memory_space<vmem>>, vector<64x512xf32>,
    %cst_5 = arith.constant 0.000000e+00 : f32
    %9 = vector.broadcast %cst_5 : f32 to vector<8x128xf32>
    %cst_6 = arith.constant 0.000000e+00 : f32
    %10 = vector.broadcast %cst_6 : f32 to vector<8x128xf32>
    %c0_i32 = arith.constant 0 : i32
    %c8_i32 = arith.constant 8 : i32
    %11 = arith.muli %c0_i32, %c8_i32 : i32
    %12 = tpu.assume_multiple %11, 8 : i32
    %13 = arith.index_cast %12 : i32 to index
    %c0_7 = arith.constant 0 : index
    %14 = vector.load %arg6[%13, %c0_7] : memref<64x512xf32, #tpu.memory_space<vmem>>, vector<8x512xf32>
    %15 = arith.truncf %9 : vector<8x128xf32> to vector<8x128xbf16>
    %c0_8 = arith.constant 0 : index
    %c0_9 = arith.constant 0 : index
    %16 = vector.load %arg2[%c0_8, %c0_9] : memref<128x512xbf16, #tpu.memory_space<vmem>>, vector<128x512xbf16>
    %cst_10 = arith.constant dense<0.000000e+00> : vector<8x512xf32>
    %17 = tpu.matmul %15, %16, %cst_10 {dimension_numbers = #tpu.dot_dimension_numbers<[1], [0], [0], [1], [0, 0, 1, 1], [], []>} : vector<8x128xbf16>, vector<128x512xbf16>, vector<8x512xf32> -> vector<8x512xf32>
    %18 = arith.addf %14, %17 : vector<8x512xf32>
    %19 = vector.extract_strided_slice %18 {offsets = [0, 0], sizes = [8, 128], strides = [1, 1]} : vector<8x512xf32> to vector<8x128xf32>
    %cst_11 = arith.constant 5.000000e-01 : f32
    %20 = vector.broadcast %cst_11 : f32 to vector<8x128xf32>
    %21 = arith.mulf %20, %19 : vector<8x128xf32>
    %22 = math.tanh %21 : vector<8x128xf32>
    %cst_12 = arith.constant 5.000000e-01 : f32
    %23 = vector.broadcast %cst_12 : f32 to vector<8x128xf32>
    %24 = arith.mulf %23, %22 : vector<8x128xf32>
    %cst_13 = arith.constant 5.000000e-01 : f32
    %25 = vector.broadcast %cst_13 : f32 to vector<8x128xf32>
    %26 = arith.addf %24, %25 : vector<8x128xf32>
    %27 = vector.extract_strided_slice %18 {offsets = [0, 128], sizes = [8, 128], strides = [1, 1]} : vector<8x512xf32> to vector<8x128xf32>
    %cst_14 = arith.constant 5.000000e-01 : f32
    %28 = vector.broadcast %cst_14 : f32 to vector<8x128xf32>
    %29 = arith.mulf %28, %27 : vector<8x128xf32>
    %30 = math.tanh %29 : vector<8x128xf32>
    %cst_15 = arith.constant 5.000000e-01 : f32
    %31 = vector.broadcast %cst_15 : f32 to vector<8x128xf32>
    %32 = arith.mulf %31, %30 : vector<8x128xf32>
    %cst_16 = arith.constant 5.000000e-01 : f32
    %33 = vector.broadcast %cst_16 : f32 to vector<8x128xf32>
    %34 = arith.addf %32, %33 : vector<8x128xf32>
    %35 = vector.extract_strided_slice %18 {offsets = [0, 256], sizes = [8, 128], strides = [1, 1]} : vector<8x512xf32> to vector<8x128xf32>
    %36 = math.tanh %35 : vector<8x128xf32>
    %37 = vector.extract_strided_slice %18 {offsets = [0, 384], sizes = [8, 128], strides = [1, 1]} : vector<8x512xf32> to vector<8x128xf32>
    %cst_17 = arith.constant 5.000000e-01 : f32
    %38 = vector.broadcast %cst_17 : f32 to vector<8x128xf32>
    %39 = arith.mulf %38, %37 : vector<8x128xf32>
    %40 = math.tanh %39 : vector<8x128xf32>
    %cst_18 = arith.constant 5.000000e-01 : f32
    %41 = vector.broadcast %cst_18 : f32 to vector<8x128xf32>
    %42 = arith.mulf %41, %40 : vector<8x128xf32>
    %cst_19 = arith.constant 5.000000e-01 : f32
    %43 = vector.broadcast %cst_19 : f32 to vector<8x128xf32>
    %44 = arith.addf %42, %43 : vector<8x128xf32>
    %45 = arith.mulf %34, %10 : vector<8x128xf32>
    %46 = arith.mulf %26, %36 : vector<8x128xf32>
    %47 = arith.addf %45, %46 : vector<8x128xf32>
    %48 = math.tanh %47 : vector<8x128xf32>
    %49 = arith.mulf %44, %48 : vector<8x128xf32>
    %c1_i32 = arith.constant 1 : i32
    %c8_i32_20 = arith.constant 8 : i32
    %50 = arith.muli %c1_i32, %c8_i32_20 : i32
    %51 = tpu.assume_multiple %50, 8 : i32
    %52 = arith.index_cast %51 : i32 to index
    %c0_21 = arith.constant 0 : index
    %53 = vector.load %arg6[%52, %c0_21] : memref<64x512xf32, #tpu.memory_space<vmem>>, vector<8x512xf32>
    %54 = arith.truncf %49 : vector<8x128xf32> to vector<8x128xbf16>
    %c0_22 = arith.constant 0 : index
    %c0_23 = arith.constant 0 : index
    %55 = vector.load %arg2[%c0_22, %c0_23] : memref<128x512xbf16, #tpu.memory_space<vmem>>, vector<128x512xbf16>
    %cst_24 = arith.constant dense<0.000000e+00> : vector<8x512xf32>
    %56 = tpu.matmul %54, %55, %cst_24 {dimension_numbers = #tpu.dot_dimension_numbers<[1], [0], [0], [1], [0, 0, 1, 1], [], []>} : vector<8x128xbf16>, vector<128x512xbf16>, vector<8x512xf32> -> vector<8x512xf32>
    %57 = arith.addf %53, %56 : vector<8x512xf32>
    %58 = vector.extract_strided_slice %57 {offsets = [0, 0], sizes = [8, 128], strides = [1, 1]} : vector<8x512xf32> to vector<8x128xf32>
    %cst_25 = arith.constant 5.000000e-01 : f32
    %59 = vector.broadcast %cst_25 : f32 to vector<8x128xf32>
    %60 = arith.mulf %59, %58 : vector<8x128xf32>
    %61 = math.tanh %60 : vector<8x128xf32>
    %cst_26 = arith.constant 5.000000e-01 : f32
    %62 = vector.broadcast %cst_26 : f32 to vector<8x128xf32>
    %63 = arith.mulf %62, %61 : vector<8x128xf32>
    %cst_27 = arith.constant 5.000000e-01 : f32
    %64 = vector.broadcast %cst_27 : f32 to vector<8x128xf32>
    %65 = arith.addf %63, %64 : vector<8x128xf32>
    %66 = vector.extract_strided_slice %57 {offsets = [0, 128], sizes = [8, 128], strides = [1, 1]} : vector<8x512xf32> to vector<8x128xf32>
    %cst_28 = arith.constant 5.000000e-01 : f32
    %67 = vector.broadcast %cst_28 : f32 to vector<8x128xf32>
    %68 = arith.mulf %67, %66 : vector<8x128xf32>
    %69 = math.tanh %68 : vector<8x128xf32>
    %cst_29 = arith.constant 5.000000e-01 : f32
    %70 = vector.broadcast %cst_29 : f32 to vector<8x128xf32>
    %71 = arith.mulf %70, %69 : vector<8x128xf32>
    %cst_30 = arith.constant 5.000000e-01 : f32
    %72 = vector.broadcast %cst_30 : f32 to vector<8x128xf32>
    %73 = arith.addf %71, %72 : vector<8x128xf32>
    %74 = vector.extract_strided_slice %57 {offsets = [0, 256], sizes = [8, 128], strides = [1, 1]} : vector<8x512xf32> to vector<8x128xf32>
    %75 = math.tanh %74 : vector<8x128xf32>
    %76 = vector.extract_strided_slice %57 {offsets = [0, 384], sizes = [8, 128], strides = [1, 1]} : vector<8x512xf32> to vector<8x128xf32>
    %cst_31 = arith.constant 5.000000e-01 : f32
    %77 = vector.broadcast %cst_31 : f32 to vector<8x128xf32>
    %78 = arith.mulf %77, %76 : vector<8x128xf32>
    %79 = math.tanh %78 : vector<8x128xf32>
    %cst_32 = arith.constant 5.000000e-01 : f32
    %80 = vector.broadcast %cst_32 : f32 to vector<8x128xf32>
    %81 = arith.mulf %80, %79 : vector<8x128xf32>
    %cst_33 = arith.constant 5.000000e-01 : f32
    %82 = vector.broadcast %cst_33 : f32 to vector<8x128xf32>
    %83 = arith.addf %81, %82 : vector<8x128xf32>
    %84 = arith.mulf %73, %47 : vector<8x128xf32>
    %85 = arith.mulf %65, %75 : vector<8x128xf32>
    %86 = arith.addf %84, %85 : vector<8x128xf32>
    %87 = math.tanh %86 : vector<8x128xf32>
    %88 = arith.mulf %83, %87 : vector<8x128xf32>
    %c2_i32 = arith.constant 2 : i32
    %c8_i32_34 = arith.constant 8 : i32
    %89 = arith.muli %c2_i32, %c8_i32_34 : i32
    %90 = tpu.assume_multiple %89, 8 : i32
    %91 = arith.index_cast %90 : i32 to index
    %c0_35 = arith.constant 0 : index
    %92 = vector.load %arg6[%91, %c0_35] : memref<64x512xf32, #tpu.memory_space<vmem>>, vector<8x512xf32>
    %93 = arith.truncf %88 : vector<8x128xf32> to vector<8x128xbf16>
    %c0_36 = arith.constant 0 : index
    %c0_37 = arith.constant 0 : index
    %94 = vector.load %arg2[%c0_36, %c0_37] : memref<128x512xbf16, #tpu.memory_space<vmem>>, vector<128x512xbf16>
    %cst_38 = arith.constant dense<0.000000e+00> : vector<8x512xf32>
    %95 = tpu.matmul %93, %94, %cst_38 {dimension_numbers = #tpu.dot_dimension_numbers<[1], [0], [0], [1], [0, 0, 1, 1], [], []>} : vector<8x128xbf16>, vector<128x512xbf16>, vector<8x512xf32> -> vector<8x512xf32>
    %96 = arith.addf %92, %95 : vector<8x512xf32>
    %97 = vector.extract_strided_slice %96 {offsets = [0, 0], sizes = [8, 128], strides = [1, 1]} : vector<8x512xf32> to vector<8x128xf32>
    %cst_39 = arith.constant 5.000000e-01 : f32
    %98 = vector.broadcast %cst_39 : f32 to vector<8x128xf32>
    %99 = arith.mulf %98, %97 : vector<8x128xf32>
    %100 = math.tanh %99 : vector<8x128xf32>
    %cst_40 = arith.constant 5.000000e-01 : f32
    %101 = vector.broadcast %cst_40 : f32 to vector<8x128xf32>
    %102 = arith.mulf %101, %100 : vector<8x128xf32>
    %cst_41 = arith.constant 5.000000e-01 : f32
    %103 = vector.broadcast %cst_41 : f32 to vector<8x128xf32>
    %104 = arith.addf %102, %103 : vector<8x128xf32>
    %105 = vector.extract_strided_slice %96 {offsets = [0, 128], sizes = [8, 128], strides = [1, 1]} : vector<8x512xf32> to vector<8x128xf32>
    %cst_42 = arith.constant 5.000000e-01 : f32
    %106 = vector.broadcast %cst_42 : f32 to vector<8x128xf32>
    %107 = arith.mulf %106, %105 : vector<8x128xf32>
    %108 = math.tanh %107 : vector<8x128xf32>
    %cst_43 = arith.constant 5.000000e-01 : f32
    %109 = vector.broadcast %cst_43 : f32 to vector<8x128xf32>
    %110 = arith.mulf %109, %108 : vector<8x128xf32>
    %cst_44 = arith.constant 5.000000e-01 : f32
    %111 = vector.broadcast %cst_44 : f32 to vector<8x128xf32>
    %112 = arith.addf %110, %111 : vector<8x128xf32>
    %113 = vector.extract_strided_slice %96 {offsets = [0, 256], sizes = [8, 128], strides = [1, 1]} : vector<8x512xf32> to vector<8x128xf32>
    %114 = math.tanh %113 : vector<8x128xf32>
    %115 = vector.extract_strided_slice %96 {offsets = [0, 384], sizes = [8, 128], strides = [1, 1]} : vector<8x512xf32> to vector<8x128xf32>
    %cst_45 = arith.constant 5.000000e-01 : f32
    %116 = vector.broadcast %cst_45 : f32 to vector<8x128xf32>
    %117 = arith.mulf %116, %115 : vector<8x128xf32>
    %118 = math.tanh %117 : vector<8x128xf32>
    %cst_46 = arith.constant 5.000000e-01 : f32
    %119 = vector.broadcast %cst_46 : f32 to vector<8x128xf32>
    %120 = arith.mulf %119, %118 : vector<8x128xf32>
    %cst_47 = arith.constant 5.000000e-01 : f32
    %121 = vector.broadcast %cst_47 : f32 to vector<8x128xf32>
    %122 = arith.addf %120, %121 : vector<8x128xf32>
    %123 = arith.mulf %112, %86 : vector<8x128xf32>
    %124 = arith.mulf %104, %114 : vector<8x128xf32>
    %125 = arith.addf %123, %124 : vector<8x128xf32>
    %126 = math.tanh %125 : vector<8x128xf32>
    %127 = arith.mulf %122, %126 : vector<8x128xf32>
    %c3_i32 = arith.constant 3 : i32
    %c8_i32_48 = arith.constant 8 : i32
    %128 = arith.muli %c3_i32, %c8_i32_48 : i32
    %129 = tpu.assume_multiple %128, 8 : i32
    %130 = arith.index_cast %129 : i32 to index
    %c0_49 = arith.constant 0 : index
    %131 = vector.load %arg6[%130, %c0_49] : memref<64x512xf32, #tpu.memory_space<vmem>>, vector<8x512xf32>
    %132 = arith.truncf %127 : vector<8x128xf32> to vector<8x128xbf16>
    %c0_50 = arith.constant 0 : index
    %c0_51 = arith.constant 0 : index
    %133 = vector.load %arg2[%c0_50, %c0_51] : memref<128x512xbf16, #tpu.memory_space<vmem>>, vector<128x512xbf16>
    %cst_52 = arith.constant dense<0.000000e+00> : vector<8x512xf32>
    %134 = tpu.matmul %132, %133, %cst_52 {dimension_numbers = #tpu.dot_dimension_numbers<[1], [0], [0], [1], [0, 0, 1, 1], [], []>} : vector<8x128xbf16>, vector<128x512xbf16>, vector<8x512xf32> -> vector<8x512xf32>
    %135 = arith.addf %131, %134 : vector<8x512xf32>
    %136 = vector.extract_strided_slice %135 {offsets = [0, 0], sizes = [8, 128], strides = [1, 1]} : vector<8x512xf32> to vector<8x128xf32>
    %cst_53 = arith.constant 5.000000e-01 : f32
    %137 = vector.broadcast %cst_53 : f32 to vector<8x128xf32>
    %138 = arith.mulf %137, %136 : vector<8x128xf32>
    %139 = math.tanh %138 : vector<8x128xf32>
    %cst_54 = arith.constant 5.000000e-01 : f32
    %140 = vector.broadcast %cst_54 : f32 to vector<8x128xf32>
    %141 = arith.mulf %140, %139 : vector<8x128xf32>
    %cst_55 = arith.constant 5.000000e-01 : f32
    %142 = vector.broadcast %cst_55 : f32 to vector<8x128xf32>
    %143 = arith.addf %141, %142 : vector<8x128xf32>
    %144 = vector.extract_strided_slice %135 {offsets = [0, 128], sizes = [8, 128], strides = [1, 1]} : vector<8x512xf32> to vector<8x128xf32>
    %cst_56 = arith.constant 5.000000e-01 : f32
    %145 = vector.broadcast %cst_56 : f32 to vector<8x128xf32>
    %146 = arith.mulf %145, %144 : vector<8x128xf32>
    %147 = math.tanh %146 : vector<8x128xf32>
    %cst_57 = arith.constant 5.000000e-01 : f32
    %148 = vector.broadcast %cst_57 : f32 to vector<8x128xf32>
    %149 = arith.mulf %148, %147 : vector<8x128xf32>
    %cst_58 = arith.constant 5.000000e-01 : f32
    %150 = vector.broadcast %cst_58 : f32 to vector<8x128xf32>
    %151 = arith.addf %149, %150 : vector<8x128xf32>
    %152 = vector.extract_strided_slice %135 {offsets = [0, 256], sizes = [8, 128], strides = [1, 1]} : vector<8x512xf32> to vector<8x128xf32>
    %153 = math.tanh %152 : vector<8x128xf32>
    %154 = vector.extract_strided_slice %135 {offsets = [0, 384], sizes = [8, 128], strides = [1, 1]} : vector<8x512xf32> to vector<8x128xf32>
    %cst_59 = arith.constant 5.000000e-01 : f32
    %155 = vector.broadcast %cst_59 : f32 to vector<8x128xf32>
    %156 = arith.mulf %155, %154 : vector<8x128xf32>
    %157 = math.tanh %156 : vector<8x128xf32>
    %cst_60 = arith.constant 5.000000e-01 : f32
    %158 = vector.broadcast %cst_60 : f32 to vector<8x128xf32>
    %159 = arith.mulf %158, %157 : vector<8x128xf32>
    %cst_61 = arith.constant 5.000000e-01 : f32
    %160 = vector.broadcast %cst_61 : f32 to vector<8x128xf32>
    %161 = arith.addf %159, %160 : vector<8x128xf32>
    %162 = arith.mulf %151, %125 : vector<8x128xf32>
    %163 = arith.mulf %143, %153 : vector<8x128xf32>
    %164 = arith.addf %162, %163 : vector<8x128xf32>
    %165 = math.tanh %164 : vector<8x128xf32>
    %166 = arith.mulf %161, %165 : vector<8x128xf32>
    %c4_i32 = arith.constant 4 : i32
    %c8_i32_62 = arith.constant 8 : i32
    %167 = arith.muli %c4_i32, %c8_i32_62 : i32
    %168 = tpu.assume_multiple %167, 8 : i32
    %169 = arith.index_cast %168 : i32 to index
    %c0_63 = arith.constant 0 : index
    %170 = vector.load %arg6[%169, %c0_63] : memref<64x512xf32, #tpu.memory_space<vmem>>, vector<8x512xf32>
    %171 = arith.truncf %166 : vector<8x128xf32> to vector<8x128xbf16>
    %c0_64 = arith.constant 0 : index
    %c0_65 = arith.constant 0 : index
    %172 = vector.load %arg2[%c0_64, %c0_65] : memref<128x512xbf16, #tpu.memory_space<vmem>>, vector<128x512xbf16>
    %cst_66 = arith.constant dense<0.000000e+00> : vector<8x512xf32>
    %173 = tpu.matmul %171, %172, %cst_66 {dimension_numbers = #tpu.dot_dimension_numbers<[1], [0], [0], [1], [0, 0, 1, 1], [], []>} : vector<8x128xbf16>, vector<128x512xbf16>, vector<8x512xf32> -> vector<8x512xf32>
    %174 = arith.addf %170, %173 : vector<8x512xf32>
    %175 = vector.extract_strided_slice %174 {offsets = [0, 0], sizes = [8, 128], strides = [1, 1]} : vector<8x512xf32> to vector<8x128xf32>
    %cst_67 = arith.constant 5.000000e-01 : f32
    %176 = vector.broadcast %cst_67 : f32 to vector<8x128xf32>
    %177 = arith.mulf %176, %175 : vector<8x128xf32>
    %178 = math.tanh %177 : vector<8x128xf32>
    %cst_68 = arith.constant 5.000000e-01 : f32
    %179 = vector.broadcast %cst_68 : f32 to vector<8x128xf32>
    %180 = arith.mulf %179, %178 : vector<8x128xf32>
    %cst_69 = arith.constant 5.000000e-01 : f32
    %181 = vector.broadcast %cst_69 : f32 to vector<8x128xf32>
    %182 = arith.addf %180, %181 : vector<8x128xf32>
    %183 = vector.extract_strided_slice %174 {offsets = [0, 128], sizes = [8, 128], strides = [1, 1]} : vector<8x512xf32> to vector<8x128xf32>
    %cst_70 = arith.constant 5.000000e-01 : f32
    %184 = vector.broadcast %cst_70 : f32 to vector<8x128xf32>
    %185 = arith.mulf %184, %183 : vector<8x128xf32>
    %186 = math.tanh %185 : vector<8x128xf32>
    %cst_71 = arith.constant 5.000000e-01 : f32
    %187 = vector.broadcast %cst_71 : f32 to vector<8x128xf32>
    %188 = arith.mulf %187, %186 : vector<8x128xf32>
    %cst_72 = arith.constant 5.000000e-01 : f32
    %189 = vector.broadcast %cst_72 : f32 to vector<8x128xf32>
    %190 = arith.addf %188, %189 : vector<8x128xf32>
    %191 = vector.extract_strided_slice %174 {offsets = [0, 256], sizes = [8, 128], strides = [1, 1]} : vector<8x512xf32> to vector<8x128xf32>
    %192 = math.tanh %191 : vector<8x128xf32>
    %193 = vector.extract_strided_slice %174 {offsets = [0, 384], sizes = [8, 128], strides = [1, 1]} : vector<8x512xf32> to vector<8x128xf32>
    %cst_73 = arith.constant 5.000000e-01 : f32
    %194 = vector.broadcast %cst_73 : f32 to vector<8x128xf32>
    %195 = arith.mulf %194, %193 : vector<8x128xf32>
    %196 = math.tanh %195 : vector<8x128xf32>
    %cst_74 = arith.constant 5.000000e-01 : f32
    %197 = vector.broadcast %cst_74 : f32 to vector<8x128xf32>
    %198 = arith.mulf %197, %196 : vector<8x128xf32>
    %cst_75 = arith.constant 5.000000e-01 : f32
    %199 = vector.broadcast %cst_75 : f32 to vector<8x128xf32>
    %200 = arith.addf %198, %199 : vector<8x128xf32>
    %201 = arith.mulf %190, %164 : vector<8x128xf32>
    %202 = arith.mulf %182, %192 : vector<8x128xf32>
    %203 = arith.addf %201, %202 : vector<8x128xf32>
    %204 = math.tanh %203 : vector<8x128xf32>
    %205 = arith.mulf %200, %204 : vector<8x128xf32>
    %c5_i32 = arith.constant 5 : i32
    %c8_i32_76 = arith.constant 8 : i32
    %206 = arith.muli %c5_i32, %c8_i32_76 : i32
    %207 = tpu.assume_multiple %206, 8 : i32
    %208 = arith.index_cast %207 : i32 to index
    %c0_77 = arith.constant 0 : index
    %209 = vector.load %arg6[%208, %c0_77] : memref<64x512xf32, #tpu.memory_space<vmem>>, vector<8x512xf32>
    %210 = arith.truncf %205 : vector<8x128xf32> to vector<8x128xbf16>
    %c0_78 = arith.constant 0 : index
    %c0_79 = arith.constant 0 : index
    %211 = vector.load %arg2[%c0_78, %c0_79] : memref<128x512xbf16, #tpu.memory_space<vmem>>, vector<128x512xbf16>
    %cst_80 = arith.constant dense<0.000000e+00> : vector<8x512xf32>
    %212 = tpu.matmul %210, %211, %cst_80 {dimension_numbers = #tpu.dot_dimension_numbers<[1], [0], [0], [1], [0, 0, 1, 1], [], []>} : vector<8x128xbf16>, vector<128x512xbf16>, vector<8x512xf32> -> vector<8x512xf32>
    %213 = arith.addf %209, %212 : vector<8x512xf32>
    %214 = vector.extract_strided_slice %213 {offsets = [0, 0], sizes = [8, 128], strides = [1, 1]} : vector<8x512xf32> to vector<8x128xf32>
    %cst_81 = arith.constant 5.000000e-01 : f32
    %215 = vector.broadcast %cst_81 : f32 to vector<8x128xf32>
    %216 = arith.mulf %215, %214 : vector<8x128xf32>
    %217 = math.tanh %216 : vector<8x128xf32>
    %cst_82 = arith.constant 5.000000e-01 : f32
    %218 = vector.broadcast %cst_82 : f32 to vector<8x128xf32>
    %219 = arith.mulf %218, %217 : vector<8x128xf32>
    %cst_83 = arith.constant 5.000000e-01 : f32
    %220 = vector.broadcast %cst_83 : f32 to vector<8x128xf32>
    %221 = arith.addf %219, %220 : vector<8x128xf32>
    %222 = vector.extract_strided_slice %213 {offsets = [0, 128], sizes = [8, 128], strides = [1, 1]} : vector<8x512xf32> to vector<8x128xf32>
    %cst_84 = arith.constant 5.000000e-01 : f32
    %223 = vector.broadcast %cst_84 : f32 to vector<8x128xf32>
    %224 = arith.mulf %223, %222 : vector<8x128xf32>
    %225 = math.tanh %224 : vector<8x128xf32>
    %cst_85 = arith.constant 5.000000e-01 : f32
    %226 = vector.broadcast %cst_85 : f32 to vector<8x128xf32>
    %227 = arith.mulf %226, %225 : vector<8x128xf32>
    %cst_86 = arith.constant 5.000000e-01 : f32
    %228 = vector.broadcast %cst_86 : f32 to vector<8x128xf32>
    %229 = arith.addf %227, %228 : vector<8x128xf32>
    %230 = vector.extract_strided_slice %213 {offsets = [0, 256], sizes = [8, 128], strides = [1, 1]} : vector<8x512xf32> to vector<8x128xf32>
    %231 = math.tanh %230 : vector<8x128xf32>
    %232 = vector.extract_strided_slice %213 {offsets = [0, 384], sizes = [8, 128], strides = [1, 1]} : vector<8x512xf32> to vector<8x128xf32>
    %cst_87 = arith.constant 5.000000e-01 : f32
    %233 = vector.broadcast %cst_87 : f32 to vector<8x128xf32>
    %234 = arith.mulf %233, %232 : vector<8x128xf32>
    %235 = math.tanh %234 : vector<8x128xf32>
    %cst_88 = arith.constant 5.000000e-01 : f32
    %236 = vector.broadcast %cst_88 : f32 to vector<8x128xf32>
    %237 = arith.mulf %236, %235 : vector<8x128xf32>
    %cst_89 = arith.constant 5.000000e-01 : f32
    %238 = vector.broadcast %cst_89 : f32 to vector<8x128xf32>
    %239 = arith.addf %237, %238 : vector<8x128xf32>
    %240 = arith.mulf %229, %203 : vector<8x128xf32>
    %241 = arith.mulf %221, %231 : vector<8x128xf32>
    %242 = arith.addf %240, %241 : vector<8x128xf32>
    %243 = math.tanh %242 : vector<8x128xf32>
    %244 = arith.mulf %239, %243 : vector<8x128xf32>
    %c6_i32 = arith.constant 6 : i32
    %c8_i32_90 = arith.constant 8 : i32
    %245 = arith.muli %c6_i32, %c8_i32_90 : i32
    %246 = tpu.assume_multiple %245, 8 : i32
    %247 = arith.index_cast %246 : i32 to index
    %c0_91 = arith.constant 0 : index
    %248 = vector.load %arg6[%247, %c0_91] : memref<64x512xf32, #tpu.memory_space<vmem>>, vector<8x512xf32>
    %249 = arith.truncf %244 : vector<8x128xf32> to vector<8x128xbf16>
    %c0_92 = arith.constant 0 : index
    %c0_93 = arith.constant 0 : index
    %250 = vector.load %arg2[%c0_92, %c0_93] : memref<128x512xbf16, #tpu.memory_space<vmem>>, vector<128x512xbf16>
    %cst_94 = arith.constant dense<0.000000e+00> : vector<8x512xf32>
    %251 = tpu.matmul %249, %250, %cst_94 {dimension_numbers = #tpu.dot_dimension_numbers<[1], [0], [0], [1], [0, 0, 1, 1], [], []>} : vector<8x128xbf16>, vector<128x512xbf16>, vector<8x512xf32> -> vector<8x512xf32>
    %252 = arith.addf %248, %251 : vector<8x512xf32>
    %253 = vector.extract_strided_slice %252 {offsets = [0, 0], sizes = [8, 128], strides = [1, 1]} : vector<8x512xf32> to vector<8x128xf32>
    %cst_95 = arith.constant 5.000000e-01 : f32
    %254 = vector.broadcast %cst_95 : f32 to vector<8x128xf32>
    %255 = arith.mulf %254, %253 : vector<8x128xf32>
    %256 = math.tanh %255 : vector<8x128xf32>
    %cst_96 = arith.constant 5.000000e-01 : f32
    %257 = vector.broadcast %cst_96 : f32 to vector<8x128xf32>
    %258 = arith.mulf %257, %256 : vector<8x128xf32>
    %cst_97 = arith.constant 5.000000e-01 : f32
    %259 = vector.broadcast %cst_97 : f32 to vector<8x128xf32>
    %260 = arith.addf %258, %259 : vector<8x128xf32>
    %261 = vector.extract_strided_slice %252 {offsets = [0, 128], sizes = [8, 128], strides = [1, 1]} : vector<8x512xf32> to vector<8x128xf32>
    %cst_98 = arith.constant 5.000000e-01 : f32
    %262 = vector.broadcast %cst_98 : f32 to vector<8x128xf32>
    %263 = arith.mulf %262, %261 : vector<8x128xf32>
    %264 = math.tanh %263 : vector<8x128xf32>
    %cst_99 = arith.constant 5.000000e-01 : f32
    %265 = vector.broadcast %cst_99 : f32 to vector<8x128xf32>
    %266 = arith.mulf %265, %264 : vector<8x128xf32>
    %cst_100 = arith.constant 5.000000e-01 : f32
    %267 = vector.broadcast %cst_100 : f32 to vector<8x128xf32>
    %268 = arith.addf %266, %267 : vector<8x128xf32>
    %269 = vector.extract_strided_slice %252 {offsets = [0, 256], sizes = [8, 128], strides = [1, 1]} : vector<8x512xf32> to vector<8x128xf32>
    %270 = math.tanh %269 : vector<8x128xf32>
    %271 = vector.extract_strided_slice %252 {offsets = [0, 384], sizes = [8, 128], strides = [1, 1]} : vector<8x512xf32> to vector<8x128xf32>
    %cst_101 = arith.constant 5.000000e-01 : f32
    %272 = vector.broadcast %cst_101 : f32 to vector<8x128xf32>
    %273 = arith.mulf %272, %271 : vector<8x128xf32>
    %274 = math.tanh %273 : vector<8x128xf32>
    %cst_102 = arith.constant 5.000000e-01 : f32
    %275 = vector.broadcast %cst_102 : f32 to vector<8x128xf32>
    %276 = arith.mulf %275, %274 : vector<8x128xf32>
    %cst_103 = arith.constant 5.000000e-01 : f32
    %277 = vector.broadcast %cst_103 : f32 to vector<8x128xf32>
    %278 = arith.addf %276, %277 : vector<8x128xf32>
    %279 = arith.mulf %268, %242 : vector<8x128xf32>
    %280 = arith.mulf %260, %270 : vector<8x128xf32>
    %281 = arith.addf %279, %280 : vector<8x128xf32>
    %282 = math.tanh %281 : vector<8x128xf32>
    %283 = arith.mulf %278, %282 : vector<8x128xf32>
    %c7_i32 = arith.constant 7 : i32
    %c8_i32_104 = arith.constant 8 : i32
    %284 = arith.muli %c7_i32, %c8_i32_104 : i32
    %285 = tpu.assume_multiple %284, 8 : i32
    %286 = arith.index_cast %285 : i32 to index
    %c0_105 = arith.constant 0 : index
    %287 = vector.load %arg6[%286, %c0_105] : memref<64x512xf32, #tpu.memory_space<vmem>>, vector<8x512xf32>
    %288 = arith.truncf %283 : vector<8x128xf32> to vector<8x128xbf16>
    %c0_106 = arith.constant 0 : index
    %c0_107 = arith.constant 0 : index
    %289 = vector.load %arg2[%c0_106, %c0_107] : memref<128x512xbf16, #tpu.memory_space<vmem>>, vector<128x512xbf16>
    %cst_108 = arith.constant dense<0.000000e+00> : vector<8x512xf32>
    %290 = tpu.matmul %288, %289, %cst_108 {dimension_numbers = #tpu.dot_dimension_numbers<[1], [0], [0], [1], [0, 0, 1, 1], [], []>} : vector<8x128xbf16>, vector<128x512xbf16>, vector<8x512xf32> -> vector<8x512xf32>
    %291 = arith.addf %287, %290 : vector<8x512xf32>
    %292 = vector.extract_strided_slice %291 {offsets = [0, 0], sizes = [8, 128], strides = [1, 1]} : vector<8x512xf32> to vector<8x128xf32>
    %cst_109 = arith.constant 5.000000e-01 : f32
    %293 = vector.broadcast %cst_109 : f32 to vector<8x128xf32>
    %294 = arith.mulf %293, %292 : vector<8x128xf32>
    %295 = math.tanh %294 : vector<8x128xf32>
    %cst_110 = arith.constant 5.000000e-01 : f32
    %296 = vector.broadcast %cst_110 : f32 to vector<8x128xf32>
    %297 = arith.mulf %296, %295 : vector<8x128xf32>
    %cst_111 = arith.constant 5.000000e-01 : f32
    %298 = vector.broadcast %cst_111 : f32 to vector<8x128xf32>
    %299 = arith.addf %297, %298 : vector<8x128xf32>
    %300 = vector.extract_strided_slice %291 {offsets = [0, 128], sizes = [8, 128], strides = [1, 1]} : vector<8x512xf32> to vector<8x128xf32>
    %cst_112 = arith.constant 5.000000e-01 : f32
    %301 = vector.broadcast %cst_112 : f32 to vector<8x128xf32>
    %302 = arith.mulf %301, %300 : vector<8x128xf32>
    %303 = math.tanh %302 : vector<8x128xf32>
    %cst_113 = arith.constant 5.000000e-01 : f32
    %304 = vector.broadcast %cst_113 : f32 to vector<8x128xf32>
    %305 = arith.mulf %304, %303 : vector<8x128xf32>
    %cst_114 = arith.constant 5.000000e-01 : f32
    %306 = vector.broadcast %cst_114 : f32 to vector<8x128xf32>
    %307 = arith.addf %305, %306 : vector<8x128xf32>
    %308 = vector.extract_strided_slice %291 {offsets = [0, 256], sizes = [8, 128], strides = [1, 1]} : vector<8x512xf32> to vector<8x128xf32>
    %309 = math.tanh %308 : vector<8x128xf32>
    %310 = vector.extract_strided_slice %291 {offsets = [0, 384], sizes = [8, 128], strides = [1, 1]} : vector<8x512xf32> to vector<8x128xf32>
    %cst_115 = arith.constant 5.000000e-01 : f32
    %311 = vector.broadcast %cst_115 : f32 to vector<8x128xf32>
    %312 = arith.mulf %311, %310 : vector<8x128xf32>
    %313 = math.tanh %312 : vector<8x128xf32>
    %cst_116 = arith.constant 5.000000e-01 : f32
    %314 = vector.broadcast %cst_116 : f32 to vector<8x128xf32>
    %315 = arith.mulf %314, %313 : vector<8x128xf32>
    %cst_117 = arith.constant 5.000000e-01 : f32
    %316 = vector.broadcast %cst_117 : f32 to vector<8x128xf32>
    %317 = arith.addf %315, %316 : vector<8x128xf32>
    %318 = arith.mulf %307, %281 : vector<8x128xf32>
    %319 = arith.mulf %299, %309 : vector<8x128xf32>
    %320 = arith.addf %318, %319 : vector<8x128xf32>
    %321 = math.tanh %320 : vector<8x128xf32>
    %322 = arith.mulf %317, %321 : vector<8x128xf32>
    %c8_i32_118 = arith.constant 8 : i32
    %323 = arith.truncf %322 : vector<8x128xf32> to vector<8x128xbf16>
    %c0_119 = arith.constant 0 : index
    %c0_120 = arith.constant 0 : index
    %324 = vector.load %arg3[%c0_119, %c0_120] : memref<128x128xbf16, #tpu.memory_space<vmem>>, vector<128x128xbf16>
    %cst_121 = arith.constant dense<0.000000e+00> : vector<8x128xf32>
    %325 = tpu.matmul %323, %324, %cst_121 {dimension_numbers = #tpu.dot_dimension_numbers<[1], [0], [0], [1], [0, 0, 1, 1], [], []>} : vector<8x128xbf16>, vector<128x128xbf16>, vector<8x128xf32> -> vector<8x128xf32>
    %c0_122 = arith.constant 0 : index
    %c0_123 = arith.constant 0 : index
    %326 = vector.load %arg4[%c0_122, %c0_123] : memref<1x128xf32, #tpu.memory_space<vmem>>, vector<1x128xf32>
    %327 = vector.broadcast %326 : vector<1x128xf32> to vector<8x128xf32>
    %328 = arith.addf %325, %327 : vector<8x128xf32>
    %c0_124 = arith.constant 0 : index
    %c0_125 = arith.constant 0 : index
    %329 = vector.load %arg5[%c0_124, %c0_125] : memref<8x128xf32, #tpu.memory_space<vmem>>, vector<8x128xf32>
    tpu.vector_store %arg5[%c0_124, %c0_125], %328 {strides = array<i32>} : memref<8x128xf32, #tpu.memory_space<vmem>>, vector<8x128xf32>,
    return
  }
}

</mosaic_0001>

<llo_original>
// kernel: tpu_custom_call.1
$region0: #{tpu_custom_call.1}
  #allocation0 [shape = 'u32[]', space=smem, size = 0x4, offset = 0x4, fixed_abs, tag = 'smem constant byte address 0x4 - core index']
  #allocation1 [shape = 'u32[144,128]{1,0:T(1,128)}', space=vmem, size = 0x12000, scoped, tag = 'internal scratch']
  #allocation2 [shape = 'f32[64,512]{1,0:T(8,128)}', space=vmem, size = 0x20000, scoped, tag = 'scratch operand']
  %s0 = inlined_call_operand.vmem [shape: s32[64,1], index: 0, kind: input, shape index: {}]
  %s1 = inlined_call_operand.hbm [shape: f32[32,512], index: 1, kind: input, shape index: {}]
  %s2 = inlined_call_operand.hbm [shape: bf16[128,512], index: 2, kind: input, shape index: {}]
  %s3 = inlined_call_operand.vmem [shape: bf16[128,128], index: 3, kind: input, shape index: {}]
  %s4 = inlined_call_operand.vmem [shape: f32[1,128], index: 4, kind: input, shape index: {}]
  %s5 = inlined_call_operand.hbm [shape: f32[8,128], index: 5, kind: output, shape index: {}]
  %s6 = sld [smem:[#allocation0]]
  $region38: #{tpu_custom_call.1} parent=0
    _
  %s8 = ssub.s32 1, %s6
  %s9 = scalar_select 0, %s8, %s6
  $region1: #{tpu_custom_call.1} parent=0
    #allocation3 [shape = 'u8[65536]{0}', space=vmem, size = 0x10000, scoped, tag = 'input window, operand 1, single buffered']
    #allocation4 [shape = 's32[1]{0}', space=sflag, size = 0x4, scoped, tag = 'scoped memory for tpu_custom_call.1']
    #allocation5 [shape = 's32[1]{0}', space=sflag, size = 0x4, scoped, tag = 'scoped memory for tpu_custom_call.1']
    #allocation6 [shape = 'u8[131072]{0}', space=vmem, size = 0x20000, scoped, tag = 'input window, operand 2, single buffered']
    #allocation7 [shape = 's32[1]{0}', space=sflag, size = 0x4, scoped, tag = 'scoped memory for tpu_custom_call.1']
    #allocation8 [shape = 'u8[4096]{0}', space=vmem, size = 0x1000, scoped, tag = 'output window, operand 0, single buffered']
    %10 = vsyncpa [#allocation4], 0
    %11 = vsyncpa [#allocation7], 0
    %12 = vsyncpa [#allocation5], 0
    // Predicated region
    $region2: #{tpu_custom_call.1} parent=1 // pred_check
      _
    $region3: #{tpu_custom_call.1} parent=1 // pred_check_branch
      %14 = sbr.rel (0) target = $region5
    $region4: #{tpu_custom_call.1} parent=1 // pred_region
      _
    $region5: #{tpu_custom_call.1} parent=1 // pred_fallthru
      _
    // Predicated region
    $region6: #{tpu_custom_call.1} parent=1 // pred_check
      _
    $region7: #{tpu_custom_call.1} parent=1 // pred_check_branch
      %16 = sbr.rel (0) target = $region9
    $region8: #{tpu_custom_call.1} parent=1 // pred_region
      %s18 = ssub.s32 2048, 2048
      %19 = vsyncadd [#allocation4], %s18
      %s20 = sshll.u32 [#allocation3], 4
      %s21 = int_to_ptr.vmem [resolvable:$true] %s20
      %26 = dma.hbm_to_vmem [thread:$0]  %s1, 2048, %s21, [#allocation4], 512, 512, 32
    $region9: #{tpu_custom_call.1} parent=1 // pred_fallthru
      _
    // Predicated region
    $region10: #{tpu_custom_call.1} parent=1 // pred_check
      _
    $region11: #{tpu_custom_call.1} parent=1 // pred_check_branch
      %28 = sbr.rel (0) target = $region13
    $region12: #{tpu_custom_call.1} parent=1 // pred_region
      %s30 = ssub.s32 4096, 4096
      %31 = vsyncadd [#allocation7], %s30
      %s32 = sshll.u32 [#allocation6], 4
      %s33 = int_to_ptr.vmem [resolvable:$true] %s32
      %38 = dma.hbm_to_vmem [thread:$0]  %s2, 4096, %s33, [#allocation7], 256, 256, 16
    $region13: #{tpu_custom_call.1} parent=1 // pred_fallthru
      _
    // Predicated region
    $region14: #{tpu_custom_call.1} parent=1 // pred_check
      _
    $region15: #{tpu_custom_call.1} parent=1 // pred_check_branch
      %40 = sbr.rel (0) target = $region17
    $region16: #{tpu_custom_call.1} parent=1 // pred_region
      _
    $region17: #{tpu_custom_call.1} parent=1 // pred_fallthru
      _
    // Predicated region
    $region18: #{tpu_custom_call.1} parent=1 // pred_check
      _
    $region19: #{tpu_custom_call.1} parent=1 // pred_check_branch
      %42 = sbr.rel (0) target = $region21
    $region20: #{tpu_custom_call.1} parent=1 // pred_region
      _
    $region21: #{tpu_custom_call.1} parent=1 // pred_fallthru
      _
    // Predicated region
    $region22: #{tpu_custom_call.1} parent=1 // pred_check
      _
    $region23: #{tpu_custom_call.1} parent=1 // pred_check_branch
      %44 = sbr.rel (0) target = $region25
    $region24: #{tpu_custom_call.1} parent=1 // pred_region
      %45 = dma.done [#allocation4], 2048
    $region25: #{tpu_custom_call.1} parent=1 // pred_fallthru
      _
    // Predicated region
    $region26: #{tpu_custom_call.1} parent=1 // pred_check
      _
    $region27: #{tpu_custom_call.1} parent=1 // pred_check_branch
      %47 = sbr.rel (0) target = $region29
    $region28: #{tpu_custom_call.1} parent=1 // pred_region
      %48 = dma.done [#allocation7], 4096
    $region29: #{tpu_custom_call.1} parent=1 // pred_fallthru
      _
    %v50 = vld [vmem:[%s0] sm:$0xff]
    %v51 = vld [vmem:[%s0 + $0x8] sm:$0xff]
    %v52 = vld [vmem:[%s0 + $0x10] sm:$0xff]
    %v53 = vld [vmem:[%s0 + $0x18] sm:$0xff]
    %v54 = vld [vmem:[%s0 + $0x20] sm:$0xff]
    %v55 = vld [vmem:[%s0 + $0x28] sm:$0xff]
    %v56 = vld [vmem:[%s0 + $0x30] sm:$0xff]
    %v57 = vld [vmem:[%s0 + $0x38] sm:$0xff]
    %v58 = vlaneseq
    %v59 = vand.u32 %v58, 127
    %60 = vset.pattern.permute.xlu0 0
    %61 = vperm.xlu0 %60, %v50
    %v62 = vpop.permute.xlu0 %61
    %63 = vset.pattern.permute.xlu0 0
    %64 = vperm.xlu0 %63, %v51
    %v65 = vpop.permute.xlu0 %64
    %66 = vset.pattern.permute.xlu0 0
    %67 = vperm.xlu0 %66, %v52
    %v68 = vpop.permute.xlu0 %67
    %69 = vset.pattern.permute.xlu0 0
    %70 = vperm.xlu0 %69, %v53
    %v71 = vpop.permute.xlu0 %70
    %72 = vset.pattern.permute.xlu0 0
    %73 = vperm.xlu0 %72, %v54
    %v74 = vpop.permute.xlu0 %73
    %75 = vset.pattern.permute.xlu0 0
    %76 = vperm.xlu0 %75, %v55
    %v77 = vpop.permute.xlu0 %76
    %78 = vset.pattern.permute.xlu0 0
    %79 = vperm.xlu0 %78, %v56
    %v80 = vpop.permute.xlu0 %79
    %81 = vset.pattern.permute.xlu0 0
    %82 = vperm.xlu0 %81, %v57
    %v83 = vpop.permute.xlu0 %82
    %vm84 = vcmp.eq.s32.totalorder %v62, %v59
    %vm85 = vcmp.eq.s32.totalorder %v65, %v59
    %vm86 = vcmp.eq.s32.totalorder %v68, %v59
    %vm87 = vcmp.eq.s32.totalorder %v71, %v59
    %vm88 = vcmp.eq.s32.totalorder %v74, %v59
    %vm89 = vcmp.eq.s32.totalorder %v77, %v59
    %vm90 = vcmp.eq.s32.totalorder %v80, %v59
    %vm91 = vcmp.eq.s32.totalorder %v83, %v59
    %v92 = vsel %vm84, 1, 0
    %v93 = vsel %vm85, 1, 0
    %v94 = vsel %vm86, 1, 0
    %v95 = vsel %vm87, 1, 0
    %v96 = vsel %vm88, 1, 0
    %v97 = vsel %vm89, 1, 0
    %v98 = vsel %vm90, 1, 0
    %v99 = vsel %vm91, 1, 0
    %v100 = vcvt.s32.f32 %v92
    %v101 = vcvt.s32.f32 %v93
    %v102 = vcvt.s32.f32 %v94
    %v103 = vcvt.s32.f32 %v95
    %v104 = vcvt.s32.f32 %v96
    %v105 = vcvt.s32.f32 %v97
    %v106 = vcvt.s32.f32 %v98
    %v107 = vcvt.s32.f32 %v99
    %v108 = vld [vmem:[#allocation3] sm:$0xff]
    %v109 = vld [vmem:[#allocation3 + $0x8] sm:$0xff]
    %v110 = vld [vmem:[#allocation3 + $0x10] sm:$0xff]
    %v111 = vld [vmem:[#allocation3 + $0x18] sm:$0xff]
    %v112 = vld [vmem:[#allocation3 + $0x20] sm:$0xff]
    %v113 = vld [vmem:[#allocation3 + $0x28] sm:$0xff]
    %v114 = vld [vmem:[#allocation3 + $0x30] sm:$0xff]
    %v115 = vld [vmem:[#allocation3 + $0x38] sm:$0xff]
    %v116 = vld [vmem:[#allocation3 + $0x40] sm:$0xff]
    %v117 = vld [vmem:[#allocation3 + $0x48] sm:$0xff]
    %v118 = vld [vmem:[#allocation3 + $0x50] sm:$0xff]
    %v119 = vld [vmem:[#allocation3 + $0x58] sm:$0xff]
    %v120 = vld [vmem:[#allocation3 + $0x60] sm:$0xff]
    %v121 = vld [vmem:[#allocation3 + $0x68] sm:$0xff]
    %v122 = vld [vmem:[#allocation3 + $0x70] sm:$0xff]
    %v123 = vld [vmem:[#allocation3 + $0x78] sm:$0xff]
    %vm124 = vcmask 261120
    %v126 = vsel %vm124, %v100, 0
    %v129 = vsel %vm124, %v101, 0
    %v132 = vsel %vm124, %v102, 0
    %v135 = vsel %vm124, %v103, 0
    %v138 = vsel %vm124, %v104, 0
    %v141 = vsel %vm124, %v105, 0
    %v144 = vsel %vm124, %v106, 0
    %v147 = vsel %vm124, %v107, 0
    %149 = vmatprep.subr.mxu0 %v109
    %150 = vmatpush1.msra.mxu0 %v108
    %151 = vmatprep.subr.mxu0 %v113
    %152 = vmatpush1.msra.mxu0 %v112
    %153 = vmatprep.subr.mxu0 %v117
    %154 = vmatpush1.msra.mxu0 %v116
    %155 = vmatprep.subr.mxu0 %v121
    %156 = vmatpush1.msra.mxu0 %v120
    %157 = vmatprep.subr.mxu0 0.0
    %158 = vmatpush1.msra.mxu0 0.0
    %159 = vmatprep.subr.mxu0 0.0
    %160 = vmatpush1.msra.mxu0 0.0
    %161 = vmatprep.subr.mxu0 0.0
    %162 = vmatpush1.msra.mxu0 0.0
    %163 = vmatprep.subr.mxu0 0.0
    %164 = vmatpush1.msra.mxu0 0.0
    %165 = vmatprep.subr.mxu0 0.0
    %166 = vmatpush1.msra.mxu0 0.0
    %167 = vmatprep.subr.mxu0 0.0
    %168 = vmatpush1.msra.mxu0 0.0
    %169 = vmatprep.subr.mxu0 0.0
    %170 = vmatpush1.msra.mxu0 0.0
    %171 = vmatprep.subr.mxu0 0.0
    %172 = vmatpush1.msra.mxu0 0.0
    %173 = vmatprep.subr.mxu0 0.0
    %174 = vmatpush1.msra.mxu0 0.0
    %175 = vmatprep.subr.mxu0 0.0
    %176 = vmatpush1.msra.mxu0 0.0
    %177 = vmatprep.subr.mxu0 0.0
    %178 = vmatpush1.msra.mxu0 0.0
    %179 = vmatprep.subr.mxu0 0.0
    %180 = vmatpush1.msra.mxu0 0.0
    %181 = vmatprep.subr.mxu0 0.0
    %182 = vmatpush1.msra.mxu0 0.0
    %183 = vmatprep.subr.mxu0 0.0
    %184 = vmatpush1.msra.mxu0 0.0
    %185 = vmatprep.subr.mxu0 0.0
    %186 = vmatpush1.msra.mxu0 0.0
    %187 = vmatprep.subr.mxu0 0.0
    %188 = vmatpush1.msra.mxu0 0.0
    %189 = vmatprep.subr.mxu0 0.0
    %190 = vmatpush1.msra.mxu0 0.0
    %191 = vmatprep.subr.mxu0 0.0
    %192 = vmatpush1.msra.mxu0 0.0
    %193 = vmatprep.subr.mxu0 0.0
    %194 = vmatpush1.msra.mxu0 0.0
    %195 = vmatprep.subr.mxu0 0.0
    %196 = vmatpush1.msra.mxu0 0.0
    %197 = vmatprep.subr.mxu0 0.0
    %198 = vmatpush1.msra.mxu0 0.0
    %199 = vmatprep.subr.mxu0 0.0
    %200 = vmatpush1.msra.mxu0 0.0
    %201 = vmatprep.subr.mxu0 0.0
    %202 = vmatpush1.msra.mxu0 0.0
    %203 = vmatprep.subr.mxu0 0.0
    %204 = vmatpush1.msra.mxu0 0.0
    %205 = vmatprep.subr.mxu0 0.0
    %206 = vmatpush1.msra.mxu0 0.0
    %207 = vmatprep.subr.mxu0 0.0
    %208 = vmatpush1.msra.mxu0 0.0
    %209 = vmatprep.subr.mxu0 0.0
    %210 = vmatpush1.msra.mxu0 0.0
    %211 = vmatprep.subr.mxu0 0.0
    %212 = vmatpush1.msra.mxu0 0.0
    %213 = vmatprep.mubr.f32.mxu0 0.0
    %214 = vmatmul.mubr.f32.gmra.mrb[0].mxu0 %v126
    %v215 = vpop.f32.mrb[0].mxu0
    %v216 = vadd.f32 0.0, %v215
    %v217 = vpop.f32.mrb[0].mxu0
    %v218 = vadd.f32 0.0, %v217
    %219 = vmatprep.mubr.f32.mxu0 0.0
    %220 = vmatmul.mubr.f32.gmra.mrb[0].mxu0 %v129
    %v221 = vpop.f32.mrb[0].mxu0
    %v222 = vadd.f32 0.0, %v221
    %v223 = vpop.f32.mrb[0].mxu0
    %v224 = vadd.f32 0.0, %v223
    %225 = vmatprep.mubr.f32.mxu0 0.0
    %226 = vmatmul.mubr.f32.gmra.mrb[0].mxu0 %v132
    %v227 = vpop.f32.mrb[0].mxu0
    %v228 = vadd.f32 0.0, %v227
    %v229 = vpop.f32.mrb[0].mxu0
    %v230 = vadd.f32 0.0, %v229
    %231 = vmatprep.mubr.f32.mxu0 0.0
    %232 = vmatmul.mubr.f32.gmra.mrb[0].mxu0 %v135
    %v233 = vpop.f32.mrb[0].mxu0
    %v234 = vadd.f32 0.0, %v233
    %v235 = vpop.f32.mrb[0].mxu0
    %v236 = vadd.f32 0.0, %v235
    %237 = vmatprep.mubr.f32.mxu0 0.0
    %238 = vmatmul.mubr.f32.gmra.mrb[0].mxu0 %v138
    %v239 = vpop.f32.mrb[0].mxu0
    %v240 = vadd.f32 0.0, %v239
    %v241 = vpop.f32.mrb[0].mxu0
    %v242 = vadd.f32 0.0, %v241
    %243 = vmatprep.mubr.f32.mxu0 0.0
    %244 = vmatmul.mubr.f32.gmra.mrb[0].mxu0 %v141
    %v245 = vpop.f32.mrb[0].mxu0
    %v246 = vadd.f32 0.0, %v245
    %v247 = vpop.f32.mrb[0].mxu0
    %v248 = vadd.f32 0.0, %v247
    %249 = vmatprep.mubr.f32.mxu0 0.0
    %250 = vmatmul.mubr.f32.gmra.mrb[0].mxu0 %v144
    %v251 = vpop.f32.mrb[0].mxu0
    %v252 = vadd.f32 0.0, %v251
    %v253 = vpop.f32.mrb[0].mxu0
    %v254 = vadd.f32 0.0, %v253
    %255 = vmatprep.mubr.f32.mxu0 0.0
    %256 = vmatmul.mubr.f32.gmra.mrb[0].mxu0 %v147
    %v257 = vpop.f32.mrb[0].mxu0
    %v258 = vadd.f32 0.0, %v257
    %v259 = vpop.f32.mrb[0].mxu0
    %v260 = vadd.f32 0.0, %v259
    %261 = vdwg.mxu0
    %262 = vmatprep.subr.mxu0 %v111
    %263 = vmatpush1.msra.mxu0 %v110
    %264 = vmatprep.subr.mxu0 %v115
    %265 = vmatpush1.msra.mxu0 %v114
    %266 = vmatprep.subr.mxu0 %v119
    %267 = vmatpush1.msra.mxu0 %v118
    %268 = vmatprep.subr.mxu0 %v123
    %269 = vmatpush1.msra.mxu0 %v122
    %270 = vmatprep.subr.mxu0 0.0
    %271 = vmatpush1.msra.mxu0 0.0
    %272 = vmatprep.subr.mxu0 0.0
    %273 = vmatpush1.msra.mxu0 0.0
    %274 = vmatprep.subr.mxu0 0.0
    %275 = vmatpush1.msra.mxu0 0.0
    %276 = vmatprep.subr.mxu0 0.0
    %277 = vmatpush1.msra.mxu0 0.0
    %278 = vmatprep.subr.mxu0 0.0
    %279 = vmatpush1.msra.mxu0 0.0
    %280 = vmatprep.subr.mxu0 0.0
    %281 = vmatpush1.msra.mxu0 0.0
    %282 = vmatprep.subr.mxu0 0.0
    %283 = vmatpush1.msra.mxu0 0.0
    %284 = vmatprep.subr.mxu0 0.0
    %285 = vmatpush1.msra.mxu0 0.0
    %286 = vmatprep.subr.mxu0 0.0
    %287 = vmatpush1.msra.mxu0 0.0
    %288 = vmatprep.subr.mxu0 0.0
    %289 = vmatpush1.msra.mxu0 0.0
    %290 = vmatprep.subr.mxu0 0.0
    %291 = vmatpush1.msra.mxu0 0.0
    %292 = vmatprep.subr.mxu0 0.0
    %293 = vmatpush1.msra.mxu0 0.0
    %294 = vmatprep.subr.mxu0 0.0
    %295 = vmatpush1.msra.mxu0 0.0
    %296 = vmatprep.subr.mxu0 0.0
    %297 = vmatpush1.msra.mxu0 0.0
    %298 = vmatprep.subr.mxu0 0.0
    %299 = vmatpush1.msra.mxu0 0.0
    %300 = vmatprep.subr.mxu0 0.0
    %301 = vmatpush1.msra.mxu0 0.0
    %302 = vmatprep.subr.mxu0 0.0
    %303 = vmatpush1.msra.mxu0 0.0
    %304 = vmatprep.subr.mxu0 0.0
    %305 = vmatpush1.msra.mxu0 0.0
    %306 = vmatprep.subr.mxu0 0.0
    %307 = vmatpush1.msra.mxu0 0.0
    %308 = vmatprep.subr.mxu0 0.0
    %309 = vmatpush1.msra.mxu0 0.0
    %310 = vmatprep.subr.mxu0 0.0
    %311 = vmatpush1.msra.mxu0 0.0
    %312 = vmatprep.subr.mxu0 0.0
    %313 = vmatpush1.msra.mxu0 0.0
    %314 = vmatprep.subr.mxu0 0.0
    %315 = vmatpush1.msra.mxu0 0.0
    %316 = vmatprep.subr.mxu0 0.0
    %317 = vmatpush1.msra.mxu0 0.0
    %318 = vmatprep.subr.mxu0 0.0
    %319 = vmatpush1.msra.mxu0 0.0
    %320 = vmatprep.subr.mxu0 0.0
    %321 = vmatpush1.msra.mxu0 0.0
    %322 = vmatprep.subr.mxu0 0.0
    %323 = vmatpush1.msra.mxu0 0.0
    %324 = vmatprep.subr.mxu0 0.0
    %325 = vmatpush1.msra.mxu0 0.0
    %326 = vmatprep.mubr.f32.mxu0 0.0
    %327 = vmatmul.mubr.f32.gmra.mrb[0].mxu0 %v126
    %v328 = vpop.f32.mrb[0].mxu0
    %v329 = vadd.f32 0.0, %v328
    %v330 = vpop.f32.mrb[0].mxu0
    %v331 = vadd.f32 0.0, %v330
    %332 = vmatprep.mubr.f32.mxu0 0.0
    %333 = vmatmul.mubr.f32.gmra.mrb[0].mxu0 %v129
    %v334 = vpop.f32.mrb[0].mxu0
    %v335 = vadd.f32 0.0, %v334
    %v336 = vpop.f32.mrb[0].mxu0
    %v337 = vadd.f32 0.0, %v336
    %338 = vmatprep.mubr.f32.mxu0 0.0
    %339 = vmatmul.mubr.f32.gmra.mrb[0].mxu0 %v132
    %v340 = vpop.f32.mrb[0].mxu0
    %v341 = vadd.f32 0.0, %v340
    %v342 = vpop.f32.mrb[0].mxu0
    %v343 = vadd.f32 0.0, %v342
    %344 = vmatprep.mubr.f32.mxu0 0.0
    %345 = vmatmul.mubr.f32.gmra.mrb[0].mxu0 %v135
    %v346 = vpop.f32.mrb[0].mxu0
    %v347 = vadd.f32 0.0, %v346
    %v348 = vpop.f32.mrb[0].mxu0
    %v349 = vadd.f32 0.0, %v348
    %350 = vmatprep.mubr.f32.mxu0 0.0
    %351 = vmatmul.mubr.f32.gmra.mrb[0].mxu0 %v138
    %v352 = vpop.f32.mrb[0].mxu0
    %v353 = vadd.f32 0.0, %v352
    %v354 = vpop.f32.mrb[0].mxu0
    %v355 = vadd.f32 0.0, %v354
    %356 = vmatprep.mubr.f32.mxu0 0.0
    %357 = vmatmul.mubr.f32.gmra.mrb[0].mxu0 %v141
    %v358 = vpop.f32.mrb[0].mxu0
    %v359 = vadd.f32 0.0, %v358
    %v360 = vpop.f32.mrb[0].mxu0
    %v361 = vadd.f32 0.0, %v360
    %362 = vmatprep.mubr.f32.mxu0 0.0
    %363 = vmatmul.mubr.f32.gmra.mrb[0].mxu0 %v144
    %v364 = vpop.f32.mrb[0].mxu0
    %v365 = vadd.f32 0.0, %v364
    %v366 = vpop.f32.mrb[0].mxu0
    %v367 = vadd.f32 0.0, %v366
    %368 = vmatprep.mubr.f32.mxu0 0.0
    %369 = vmatmul.mubr.f32.gmra.mrb[0].mxu0 %v147
    %v370 = vpop.f32.mrb[0].mxu0
    %v371 = vadd.f32 0.0, %v370
    %v372 = vpop.f32.mrb[0].mxu0
    %v373 = vadd.f32 0.0, %v372
    %374 = vdwg.mxu0
    %375 = vst [vmem:[#allocation2] sm:$0xff] %v216
    %376 = vst [vmem:[#allocation2 + $0x8] sm:$0xff] %v218
    %377 = vst [vmem:[#allocation2 + $0x10] sm:$0xff] %v329
    %378 = vst [vmem:[#allocation2 + $0x18] sm:$0xff] %v331
    %379 = vst [vmem:[#allocation2 + $0x20] sm:$0xff] %v222
    %380 = vst [vmem:[#allocation2 + $0x28] sm:$0xff] %v224
    %381 = vst [vmem:[#allocation2 + $0x30] sm:$0xff] %v335
    %382 = vst [vmem:[#allocation2 + $0x38] sm:$0xff] %v337
    %383 = vst [vmem:[#allocation2 + $0x40] sm:$0xff] %v228
    %384 = vst [vmem:[#allocation2 + $0x48] sm:$0xff] %v230
    %385 = vst [vmem:[#allocation2 + $0x50] sm:$0xff] %v341
    %386 = vst [vmem:[#allocation2 + $0x58] sm:$0xff] %v343
    %387 = vst [vmem:[#allocation2 + $0x60] sm:$0xff] %v234
    %388 = vst [vmem:[#allocation2 + $0x68] sm:$0xff] %v236
    %389 = vst [vmem:[#allocation2 + $0x70] sm:$0xff] %v347
    %390 = vst [vmem:[#allocation2 + $0x78] sm:$0xff] %v349
    %391 = vst [vmem:[#allocation2 + $0x80] sm:$0xff] %v240
    %392 = vst [vmem:[#allocation2 + $0x88] sm:$0xff] %v242
    %393 = vst [vmem:[#allocation2 + $0x90] sm:$0xff] %v353
    %394 = vst [vmem:[#allocation2 + $0x98] sm:$0xff] %v355
    %395 = vst [vmem:[#allocation2 + $0xa0] sm:$0xff] %v246
    %396 = vst [vmem:[#allocation2 + $0xa8] sm:$0xff] %v248
    %397 = vst [vmem:[#allocation2 + $0xb0] sm:$0xff] %v359
    %398 = vst [vmem:[#allocation2 + $0xb8] sm:$0xff] %v361
    %399 = vst [vmem:[#allocation2 + $0xc0] sm:$0xff] %v252
    %400 = vst [vmem:[#allocation2 + $0xc8] sm:$0xff] %v254
    %401 = vst [vmem:[#allocation2 + $0xd0] sm:$0xff] %v365
    %402 = vst [vmem:[#allocation2 + $0xd8] sm:$0xff] %v367
    %403 = vst [vmem:[#allocation2 + $0xe0] sm:$0xff] %v258
    %404 = vst [vmem:[#allocation2 + $0xe8] sm:$0xff] %v260
    %405 = vst [vmem:[#allocation2 + $0xf0] sm:$0xff] %v371
    %406 = vst [vmem:[#allocation2 + $0xf8] sm:$0xff] %v373
    %s407 = smul.u32 0, 4
    %s408 = smul.addr %s407, 8
    %s409 = scalar_lea.vmem [#allocation2], %s408
    %v410 = vld [vmem:[%s409] sm:$0xff]
    %v411 = vld [vmem:[%s409 + $0x8] sm:$0xff]
    %v412 = vld [vmem:[%s409 + $0x10] sm:$0xff]
    %v413 = vld [vmem:[%s409 + $0x18] sm:$0xff]
    %v414 = vld [vmem:[#allocation6] sm:$0xff]
    %v415 = vld [vmem:[#allocation6 + $0x8] sm:$0xff]
    %v416 = vld [vmem:[#allocation6 + $0x10] sm:$0xff]
    %v417 = vld [vmem:[#allocation6 + $0x18] sm:$0xff]
    %v418 = vld [vmem:[#allocation6 + $0x20] sm:$0xff]
    %v419 = vld [vmem:[#allocation6 + $0x28] sm:$0xff]
    %v420 = vld [vmem:[#allocation6 + $0x30] sm:$0xff]
    %v421 = vld [vmem:[#allocation6 + $0x38] sm:$0xff]
    %v422 = vld [vmem:[#allocation6 + $0x40] sm:$0xff]
    %v423 = vld [vmem:[#allocation6 + $0x48] sm:$0xff]
    %v424 = vld [vmem:[#allocation6 + $0x50] sm:$0xff]
    %v425 = vld [vmem:[#allocation6 + $0x58] sm:$0xff]
    %v426 = vld [vmem:[#allocation6 + $0x60] sm:$0xff]
    %v427 = vld [vmem:[#allocation6 + $0x68] sm:$0xff]
    %v428 = vld [vmem:[#allocation6 + $0x70] sm:$0xff]
    %v429 = vld [vmem:[#allocation6 + $0x78] sm:$0xff]
    %v430 = vld [vmem:[#allocation6 + $0x80] sm:$0xff]
    %v431 = vld [vmem:[#allocation6 + $0x88] sm:$0xff]
    %v432 = vld [vmem:[#allocation6 + $0x90] sm:$0xff]
    %v433 = vld [vmem:[#allocation6 + $0x98] sm:$0xff]
    %v434 = vld [vmem:[#allocation6 + $0xa0] sm:$0xff]
    %v435 = vld [vmem:[#allocation6 + $0xa8] sm:$0xff]
    %v436 = vld [vmem:[#allocation6 + $0xb0] sm:$0xff]
    %v437 = vld [vmem:[#allocation6 + $0xb8] sm:$0xff]
    %v438 = vld [vmem:[#allocation6 + $0xc0] sm:$0xff]
    %v439 = vld [vmem:[#allocation6 + $0xc8] sm:$0xff]
    %v440 = vld [vmem:[#allocation6 + $0xd0] sm:$0xff]
    %v441 = vld [vmem:[#allocation6 + $0xd8] sm:$0xff]
    %v442 = vld [vmem:[#allocation6 + $0xe0] sm:$0xff]
    %v443 = vld [vmem:[#allocation6 + $0xe8] sm:$0xff]
    %v444 = vld [vmem:[#allocation6 + $0xf0] sm:$0xff]
    %v445 = vld [vmem:[#allocation6 + $0xf8] sm:$0xff]
    %v478 = vunpack.c.l.b16 %v414
    %v479 = vunpack.c.h.b16 %v414
    %v480 = vunpack.c.l.b16 %v415
    %v481 = vunpack.c.h.b16 %v415
    %v482 = vunpack.c.l.b16 %v416
    %v483 = vunpack.c.h.b16 %v416
    %v484 = vunpack.c.l.b16 %v417
    %v485 = vunpack.c.h.b16 %v417
    %v486 = vunpack.c.l.b16 %v418
    %v487 = vunpack.c.h.b16 %v418
    %v488 = vunpack.c.l.b16 %v419
    %v489 = vunpack.c.h.b16 %v419
    %v490 = vunpack.c.l.b16 %v420
    %v491 = vunpack.c.h.b16 %v420
    %v492 = vunpack.c.l.b16 %v421
    %v493 = vunpack.c.h.b16 %v421
    %v494 = vunpack.c.l.b16 %v422
    %v495 = vunpack.c.h.b16 %v422
    %v496 = vunpack.c.l.b16 %v423
    %v497 = vunpack.c.h.b16 %v423
    %v498 = vunpack.c.l.b16 %v424
    %v499 = vunpack.c.h.b16 %v424
    %v500 = vunpack.c.l.b16 %v425
    %v501 = vunpack.c.h.b16 %v425
    %v502 = vunpack.c.l.b16 %v426
    %v503 = vunpack.c.h.b16 %v426
    %v504 = vunpack.c.l.b16 %v427
    %v505 = vunpack.c.h.b16 %v427
    %v506 = vunpack.c.l.b16 %v428
    %v507 = vunpack.c.h.b16 %v428
    %v508 = vunpack.c.l.b16 %v429
    %v509 = vunpack.c.h.b16 %v429
    %v510 = vunpack.c.l.b16 %v430
    %v511 = vunpack.c.h.b16 %v430
    %v512 = vunpack.c.l.b16 %v431
    %v513 = vunpack.c.h.b16 %v431
    %v514 = vunpack.c.l.b16 %v432
    %v515 = vunpack.c.h.b16 %v432
    %v516 = vunpack.c.l.b16 %v433
    %v517 = vunpack.c.h.b16 %v433
    %v518 = vunpack.c.l.b16 %v434
    %v519 = vunpack.c.h.b16 %v434
    %v520 = vunpack.c.l.b16 %v435
    %v521 = vunpack.c.h.b16 %v435
    %v522 = vunpack.c.l.b16 %v436
    %v523 = vunpack.c.h.b16 %v436
    %v524 = vunpack.c.l.b16 %v437
    %v525 = vunpack.c.h.b16 %v437
    %v526 = vunpack.c.l.b16 %v438
    %v527 = vunpack.c.h.b16 %v438
    %v528 = vunpack.c.l.b16 %v439
    %v529 = vunpack.c.h.b16 %v439
    %v530 = vunpack.c.l.b16 %v440
    %v531 = vunpack.c.h.b16 %v440
    %v532 = vunpack.c.l.b16 %v441
    %v533 = vunpack.c.h.b16 %v441
    %v534 = vunpack.c.l.b16 %v442
    %v535 = vunpack.c.h.b16 %v442
    %v536 = vunpack.c.l.b16 %v443
    %v537 = vunpack.c.h.b16 %v443
    %v538 = vunpack.c.l.b16 %v444
    %v539 = vunpack.c.h.b16 %v444
    %v540 = vunpack.c.l.b16 %v445
    %v541 = vunpack.c.h.b16 %v445
    %v542 = vpack.c.b16 %v482, %v478
    %v543 = vpack.c.b16 %v483, %v479
    %v544 = vpack.c.b16 %v484, %v480
    %v545 = vpack.c.b16 %v485, %v481
    %v546 = vpack.c.b16 %v490, %v486
    %v547 = vpack.c.b16 %v491, %v487
    %v548 = vpack.c.b16 %v492, %v488
    %v549 = vpack.c.b16 %v493, %v489
    %v550 = vpack.c.b16 %v498, %v494
    %v551 = vpack.c.b16 %v499, %v495
    %v552 = vpack.c.b16 %v500, %v496
    %v553 = vpack.c.b16 %v501, %v497
    %v554 = vpack.c.b16 %v506, %v502
    %v555 = vpack.c.b16 %v507, %v503
    %v556 = vpack.c.b16 %v508, %v504
    %v557 = vpack.c.b16 %v509, %v505
    %v558 = vpack.c.b16 %v514, %v510
    %v559 = vpack.c.b16 %v515, %v511
    %v560 = vpack.c.b16 %v516, %v512
    %v561 = vpack.c.b16 %v517, %v513
    %v562 = vpack.c.b16 %v522, %v518
    %v563 = vpack.c.b16 %v523, %v519
    %v564 = vpack.c.b16 %v524, %v520
    %v565 = vpack.c.b16 %v525, %v521
    %v566 = vpack.c.b16 %v530, %v526
    %v567 = vpack.c.b16 %v531, %v527
    %v568 = vpack.c.b16 %v532, %v528
    %v569 = vpack.c.b16 %v533, %v529
    %v570 = vpack.c.b16 %v538, %v534
    %v571 = vpack.c.b16 %v539, %v535
    %v572 = vpack.c.b16 %v540, %v536
    %v573 = vpack.c.b16 %v541, %v537
    %606 = vmatprep.subr.bf16.mxu0 %v543
    %607 = vmatpush1.bf16.msra.mxu0 %v542
    %608 = vmatprep.subr.bf16.mxu0 %v547
    %609 = vmatpush1.bf16.msra.mxu0 %v546
    %610 = vmatprep.subr.bf16.mxu0 %v551
    %611 = vmatpush1.bf16.msra.mxu0 %v550
    %612 = vmatprep.subr.bf16.mxu0 %v555
    %613 = vmatpush1.bf16.msra.mxu0 %v554
    %614 = vmatprep.subr.bf16.mxu0 %v559
    %615 = vmatpush1.bf16.msra.mxu0 %v558
    %616 = vmatprep.subr.bf16.mxu0 %v563
    %617 = vmatpush1.bf16.msra.mxu0 %v562
    %618 = vmatprep.subr.bf16.mxu0 %v567
    %619 = vmatpush1.bf16.msra.mxu0 %v566
    %620 = vmatprep.subr.bf16.mxu0 %v571
    %621 = vmatpush1.bf16.msra.mxu0 %v570
    %622 = vmatprep.subr.bf16.mxu0 0
    %623 = vmatpush1.bf16.msra.mxu0 0
    %624 = vmatprep.subr.bf16.mxu0 0
    %625 = vmatpush1.bf16.msra.mxu0 0
    %626 = vmatprep.subr.bf16.mxu0 0
    %627 = vmatpush1.bf16.msra.mxu0 0
    %628 = vmatprep.subr.bf16.mxu0 0
    %629 = vmatpush1.bf16.msra.mxu0 0
    %630 = vmatprep.subr.bf16.mxu0 0
    %631 = vmatpush1.bf16.msra.mxu0 0
    %632 = vmatprep.subr.bf16.mxu0 0
    %633 = vmatpush1.bf16.msra.mxu0 0
    %634 = vmatprep.subr.bf16.mxu0 0
    %635 = vmatpush1.bf16.msra.mxu0 0
    %636 = vmatprep.subr.bf16.mxu0 0
    %637 = vmatpush1.bf16.msra.mxu0 0
    %638 = vmatprep.mubr.bf16.mxu0 0
    %639 = vmatmul.mubr.bf16.gmra.mrb[0].mxu0 0
    %v640 = vpop.f32.mrb[0].mxu0
    %v641 = vadd.f32 0.0, %v640
    %v642 = vpop.f32.mrb[0].mxu0
    %v643 = vadd.f32 0.0, %v642
    %v644 = vpop.f32.mrb[0].mxu0
    %v645 = vpop.f32.mrb[0].mxu0
    %646 = vdwg.mxu0
    %647 = vmatprep.subr.bf16.mxu0 %v545
    %648 = vmatpush1.bf16.msra.mxu0 %v544
    %649 = vmatprep.subr.bf16.mxu0 %v549
    %650 = vmatpush1.bf16.msra.mxu0 %v548
    %651 = vmatprep.subr.bf16.mxu0 %v553
    %652 = vmatpush1.bf16.msra.mxu0 %v552
    %653 = vmatprep.subr.bf16.mxu0 %v557
    %654 = vmatpush1.bf16.msra.mxu0 %v556
    %655 = vmatprep.subr.bf16.mxu0 %v561
    %656 = vmatpush1.bf16.msra.mxu0 %v560
    %657 = vmatprep.subr.bf16.mxu0 %v565
    %658 = vmatpush1.bf16.msra.mxu0 %v564
    %659 = vmatprep.subr.bf16.mxu0 %v569
    %660 = vmatpush1.bf16.msra.mxu0 %v568
    %661 = vmatprep.subr.bf16.mxu0 %v573
    %662 = vmatpush1.bf16.msra.mxu0 %v572
    %663 = vmatprep.subr.bf16.mxu0 0
    %664 = vmatpush1.bf16.msra.mxu0 0
    %665 = vmatprep.subr.bf16.mxu0 0
    %666 = vmatpush1.bf16.msra.mxu0 0
    %667 = vmatprep.subr.bf16.mxu0 0
    %668 = vmatpush1.bf16.msra.mxu0 0
    %669 = vmatprep.subr.bf16.mxu0 0
    %670 = vmatpush1.bf16.msra.mxu0 0
    %671 = vmatprep.subr.bf16.mxu0 0
    %672 = vmatpush1.bf16.msra.mxu0 0
    %673 = vmatprep.subr.bf16.mxu0 0
    %674 = vmatpush1.bf16.msra.mxu0 0
    %675 = vmatprep.subr.bf16.mxu0 0
    %676 = vmatpush1.bf16.msra.mxu0 0
    %677 = vmatprep.subr.bf16.mxu0 0
    %678 = vmatpush1.bf16.msra.mxu0 0
    %679 = vmatprep.mubr.bf16.mxu0 0
    %680 = vmatmul.mubr.bf16.gmra.mrb[0].mxu0 0
    %v681 = vpop.f32.mrb[0].mxu0
    %v682 = vadd.f32 0.0, %v681
    %v683 = vpop.f32.mrb[0].mxu0
    %v684 = vadd.f32 0.0, %v683
    %v685 = vpop.f32.mrb[0].mxu0
    %v686 = vpop.f32.mrb[0].mxu0
    %687 = vdwg.mxu0
    %v688 = vadd.f32 %v410, %v641
    %v689 = vadd.f32 %v411, %v643
    %v690 = vadd.f32 %v412, %v682
    %v691 = vadd.f32 %v413, %v684
    %v692 = vmul.f32 %v688, 0.5
    %v693 = vtanh.pop %v692
    %v694 = vmul.f32 %v693, 0.5
    %v695 = vadd.f32 %v694, 0.5
    %v696 = vmul.f32 %v689, 0.5
    %v697 = vtanh.pop %v696
    %v698 = vmul.f32 %v697, 0.5
    %v699 = vadd.f32 %v698, 0.5
    %v700 = vtanh.pop %v690
    %v701 = vmul.f32 %v691, 0.5
    %v702 = vtanh.pop %v701
    %v703 = vmul.f32 %v702, 0.5
    %v704 = vadd.f32 %v703, 0.5
    %v705 = vmul.f32 %v699, 0.0
    %v706 = vmul.f32 %v695, %v700
    %v707 = vadd.f32 %v705, %v706
    %v708 = vtanh.pop %v707
    %v709 = vmul.f32 %v704, %v708
    %s710 = smul.u32 1, 4
    %s711 = smul.addr %s710, 8
    %s712 = scalar_lea.vmem [#allocation2], %s711
    %v713 = vld [vmem:[%s712] sm:$0xff]
    %v714 = vld [vmem:[%s712 + $0x8] sm:$0xff]
    %v715 = vld [vmem:[%s712 + $0x10] sm:$0xff]
    %v716 = vld [vmem:[%s712 + $0x18] sm:$0xff]
    %v717 = vpack.c.bf16 %v709, %v709
    %718 = vmatprep.subr.bf16.mxu0 %v543
    %719 = vmatpush1.bf16.msra.mxu0 %v542
    %720 = vmatprep.subr.bf16.mxu0 %v547
    %721 = vmatpush1.bf16.msra.mxu0 %v546
    %722 = vmatprep.subr.bf16.mxu0 %v551
    %723 = vmatpush1.bf16.msra.mxu0 %v550
    %724 = vmatprep.subr.bf16.mxu0 %v555
    %725 = vmatpush1.bf16.msra.mxu0 %v554
    %726 = vmatprep.subr.bf16.mxu0 %v559
    %727 = vmatpush1.bf16.msra.mxu0 %v558
    %728 = vmatprep.subr.bf16.mxu0 %v563
    %729 = vmatpush1.bf16.msra.mxu0 %v562
    %730 = vmatprep.subr.bf16.mxu0 %v567
    %731 = vmatpush1.bf16.msra.mxu0 %v566
    %732 = vmatprep.subr.bf16.mxu0 %v571
    %733 = vmatpush1.bf16.msra.mxu0 %v570
    %734 = vmatprep.subr.bf16.mxu0 0
    %735 = vmatpush1.bf16.msra.mxu0 0
    %736 = vmatprep.subr.bf16.mxu0 0
    %737 = vmatpush1.bf16.msra.mxu0 0
    %738 = vmatprep.subr.bf16.mxu0 0
    %739 = vmatpush1.bf16.msra.mxu0 0
    %740 = vmatprep.subr.bf16.mxu0 0
    %741 = vmatpush1.bf16.msra.mxu0 0
    %742 = vmatprep.subr.bf16.mxu0 0
    %743 = vmatpush1.bf16.msra.mxu0 0
    %744 = vmatprep.subr.bf16.mxu0 0
    %745 = vmatpush1.bf16.msra.mxu0 0
    %746 = vmatprep.subr.bf16.mxu0 0
    %747 = vmatpush1.bf16.msra.mxu0 0
    %748 = vmatprep.subr.bf16.mxu0 0
    %749 = vmatpush1.bf16.msra.mxu0 0
    %750 = vmatprep.mubr.bf16.mxu0 0
    %751 = vmatmul.mubr.bf16.gmra.mrb[0].mxu0 %v717
    %v752 = vpop.f32.mrb[0].mxu0
    %v753 = vadd.f32 0.0, %v752
    %v754 = vpop.f32.mrb[0].mxu0
    %v755 = vadd.f32 0.0, %v754
    %v756 = vpop.f32.mrb[0].mxu0
    %v757 = vpop.f32.mrb[0].mxu0
    %758 = vdwg.mxu0
    %759 = vmatprep.subr.bf16.mxu0 %v545
    %760 = vmatpush1.bf16.msra.mxu0 %v544
    %761 = vmatprep.subr.bf16.mxu0 %v549
    %762 = vmatpush1.bf16.msra.mxu0 %v548
    %763 = vmatprep.subr.bf16.mxu0 %v553
    %764 = vmatpush1.bf16.msra.mxu0 %v552
    %765 = vmatprep.subr.bf16.mxu0 %v557
    %766 = vmatpush1.bf16.msra.mxu0 %v556
    %767 = vmatprep.subr.bf16.mxu0 %v561
    %768 = vmatpush1.bf16.msra.mxu0 %v560
    %769 = vmatprep.subr.bf16.mxu0 %v565
    %770 = vmatpush1.bf16.msra.mxu0 %v564
    %771 = vmatprep.subr.bf16.mxu0 %v569
    %772 = vmatpush1.bf16.msra.mxu0 %v568
    %773 = vmatprep.subr.bf16.mxu0 %v573
    %774 = vmatpush1.bf16.msra.mxu0 %v572
    %775 = vmatprep.subr.bf16.mxu0 0
    %776 = vmatpush1.bf16.msra.mxu0 0
    %777 = vmatprep.subr.bf16.mxu0 0
    %778 = vmatpush1.bf16.msra.mxu0 0
    %779 = vmatprep.subr.bf16.mxu0 0
    %780 = vmatpush1.bf16.msra.mxu0 0
    %781 = vmatprep.subr.bf16.mxu0 0
    %782 = vmatpush1.bf16.msra.mxu0 0
    %783 = vmatprep.subr.bf16.mxu0 0
    %784 = vmatpush1.bf16.msra.mxu0 0
    %785 = vmatprep.subr.bf16.mxu0 0
    %786 = vmatpush1.bf16.msra.mxu0 0
    %787 = vmatprep.subr.bf16.mxu0 0
    %788 = vmatpush1.bf16.msra.mxu0 0
    %789 = vmatprep.subr.bf16.mxu0 0
    %790 = vmatpush1.bf16.msra.mxu0 0
    %791 = vmatprep.mubr.bf16.mxu0 0
    %792 = vmatmul.mubr.bf16.gmra.mrb[0].mxu0 %v717
    %v793 = vpop.f32.mrb[0].mxu0
    %v794 = vadd.f32 0.0, %v793
    %v795 = vpop.f32.mrb[0].mxu0
    %v796 = vadd.f32 0.0, %v795
    %v797 = vpop.f32.mrb[0].mxu0
    %v798 = vpop.f32.mrb[0].mxu0
    %799 = vdwg.mxu0
    %v800 = vadd.f32 %v713, %v753
    %v801 = vadd.f32 %v714, %v755
    %v802 = vadd.f32 %v715, %v794
    %v803 = vadd.f32 %v716, %v796
    %v804 = vmul.f32 %v800, 0.5
    %v805 = vtanh.pop %v804
    %v806 = vmul.f32 %v805, 0.5
    %v807 = vadd.f32 %v806, 0.5
    %v808 = vmul.f32 %v801, 0.5
    %v809 = vtanh.pop %v808
    %v810 = vmul.f32 %v809, 0.5
    %v811 = vadd.f32 %v810, 0.5
    %v812 = vtanh.pop %v802
    %v813 = vmul.f32 %v803, 0.5
    %v814 = vtanh.pop %v813
    %v815 = vmul.f32 %v814, 0.5
    %v816 = vadd.f32 %v815, 0.5
    %v817 = vmul.f32 %v811, %v707
    %v818 = vmul.f32 %v807, %v812
    %v819 = vadd.f32 %v817, %v818
    %v820 = vtanh.pop %v819
    %v821 = vmul.f32 %v816, %v820
    %s822 = smul.u32 2, 4
    %s823 = smul.addr %s822, 8
    %s824 = scalar_lea.vmem [#allocation2], %s823
    %v825 = vld [vmem:[%s824] sm:$0xff]
    %v826 = vld [vmem:[%s824 + $0x8] sm:$0xff]
    %v827 = vld [vmem:[%s824 + $0x10] sm:$0xff]
    %v828 = vld [vmem:[%s824 + $0x18] sm:$0xff]
    %v829 = vpack.c.bf16 %v821, %v821
    %830 = vmatprep.subr.bf16.mxu0 %v543
    %831 = vmatpush1.bf16.msra.mxu0 %v542
    %832 = vmatprep.subr.bf16.mxu0 %v547
    %833 = vmatpush1.bf16.msra.mxu0 %v546
    %834 = vmatprep.subr.bf16.mxu0 %v551
    %835 = vmatpush1.bf16.msra.mxu0 %v550
    %836 = vmatprep.subr.bf16.mxu0 %v555
    %837 = vmatpush1.bf16.msra.mxu0 %v554
    %838 = vmatprep.subr.bf16.mxu0 %v559
    %839 = vmatpush1.bf16.msra.mxu0 %v558
    %840 = vmatprep.subr.bf16.mxu0 %v563
    %841 = vmatpush1.bf16.msra.mxu0 %v562
    %842 = vmatprep.subr.bf16.mxu0 %v567
    %843 = vmatpush1.bf16.msra.mxu0 %v566
    %844 = vmatprep.subr.bf16.mxu0 %v571
    %845 = vmatpush1.bf16.msra.mxu0 %v570
    %846 = vmatprep.subr.bf16.mxu0 0
    %847 = vmatpush1.bf16.msra.mxu0 0
    %848 = vmatprep.subr.bf16.mxu0 0
    %849 = vmatpush1.bf16.msra.mxu0 0
    %850 = vmatprep.subr.bf16.mxu0 0
    %851 = vmatpush1.bf16.msra.mxu0 0
    %852 = vmatprep.subr.bf16.mxu0 0
    %853 = vmatpush1.bf16.msra.mxu0 0
    %854 = vmatprep.subr.bf16.mxu0 0
    %855 = vmatpush1.bf16.msra.mxu0 0
    %856 = vmatprep.subr.bf16.mxu0 0
    %857 = vmatpush1.bf16.msra.mxu0 0
    %858 = vmatprep.subr.bf16.mxu0 0
    %859 = vmatpush1.bf16.msra.mxu0 0
    %860 = vmatprep.subr.bf16.mxu0 0
    %861 = vmatpush1.bf16.msra.mxu0 0
    %862 = vmatprep.mubr.bf16.mxu0 0
    %863 = vmatmul.mubr.bf16.gmra.mrb[0].mxu0 %v829
    %v864 = vpop.f32.mrb[0].mxu0
    %v865 = vadd.f32 0.0, %v864
    %v866 = vpop.f32.mrb[0].mxu0
    %v867 = vadd.f32 0.0, %v866
    %v868 = vpop.f32.mrb[0].mxu0
    %v869 = vpop.f32.mrb[0].mxu0
    %870 = vdwg.mxu0
    %871 = vmatprep.subr.bf16.mxu0 %v545
    %872 = vmatpush1.bf16.msra.mxu0 %v544
    %873 = vmatprep.subr.bf16.mxu0 %v549
    %874 = vmatpush1.bf16.msra.mxu0 %v548
    %875 = vmatprep.subr.bf16.mxu0 %v553
    %876 = vmatpush1.bf16.msra.mxu0 %v552
    %877 = vmatprep.subr.bf16.mxu0 %v557
    %878 = vmatpush1.bf16.msra.mxu0 %v556
    %879 = vmatprep.subr.bf16.mxu0 %v561
    %880 = vmatpush1.bf16.msra.mxu0 %v560
    %881 = vmatprep.subr.bf16.mxu0 %v565
    %882 = vmatpush1.bf16.msra.mxu0 %v564
    %883 = vmatprep.subr.bf16.mxu0 %v569
    %884 = vmatpush1.bf16.msra.mxu0 %v568
    %885 = vmatprep.subr.bf16.mxu0 %v573
    %886 = vmatpush1.bf16.msra.mxu0 %v572
    %887 = vmatprep.subr.bf16.mxu0 0
    %888 = vmatpush1.bf16.msra.mxu0 0
    %889 = vmatprep.subr.bf16.mxu0 0
    %890 = vmatpush1.bf16.msra.mxu0 0
    %891 = vmatprep.subr.bf16.mxu0 0
    %892 = vmatpush1.bf16.msra.mxu0 0
    %893 = vmatprep.subr.bf16.mxu0 0
    %894 = vmatpush1.bf16.msra.mxu0 0
    %895 = vmatprep.subr.bf16.mxu0 0
    %896 = vmatpush1.bf16.msra.mxu0 0
    %897 = vmatprep.subr.bf16.mxu0 0
    %898 = vmatpush1.bf16.msra.mxu0 0
    %899 = vmatprep.subr.bf16.mxu0 0
    %900 = vmatpush1.bf16.msra.mxu0 0
    %901 = vmatprep.subr.bf16.mxu0 0
    %902 = vmatpush1.bf16.msra.mxu0 0
    %903 = vmatprep.mubr.bf16.mxu0 0
    %904 = vmatmul.mubr.bf16.gmra.mrb[0].mxu0 %v829
    %v905 = vpop.f32.mrb[0].mxu0
    %v906 = vadd.f32 0.0, %v905
    %v907 = vpop.f32.mrb[0].mxu0
    %v908 = vadd.f32 0.0, %v907
    %v909 = vpop.f32.mrb[0].mxu0
    %v910 = vpop.f32.mrb[0].mxu0
    %911 = vdwg.mxu0
    %v912 = vadd.f32 %v825, %v865
    %v913 = vadd.f32 %v826, %v867
    %v914 = vadd.f32 %v827, %v906
    %v915 = vadd.f32 %v828, %v908
    %v916 = vmul.f32 %v912, 0.5
    %v917 = vtanh.pop %v916
    %v918 = vmul.f32 %v917, 0.5
    %v919 = vadd.f32 %v918, 0.5
    %v920 = vmul.f32 %v913, 0.5
    %v921 = vtanh.pop %v920
    %v922 = vmul.f32 %v921, 0.5
    %v923 = vadd.f32 %v922, 0.5
    %v924 = vtanh.pop %v914
    %v925 = vmul.f32 %v915, 0.5
    %v926 = vtanh.pop %v925
    %v927 = vmul.f32 %v926, 0.5
    %v928 = vadd.f32 %v927, 0.5
    %v929 = vmul.f32 %v923, %v819
    %v930 = vmul.f32 %v919, %v924
    %v931 = vadd.f32 %v929, %v930
    %v932 = vtanh.pop %v931
    %v933 = vmul.f32 %v928, %v932
    %s934 = smul.u32 3, 4
    %s935 = smul.addr %s934, 8
    %s936 = scalar_lea.vmem [#allocation2], %s935
    %v937 = vld [vmem:[%s936] sm:$0xff]
    %v938 = vld [vmem:[%s936 + $0x8] sm:$0xff]
    %v939 = vld [vmem:[%s936 + $0x10] sm:$0xff]
    %v940 = vld [vmem:[%s936 + $0x18] sm:$0xff]
    %v941 = vpack.c.bf16 %v933, %v933
    %942 = vmatprep.subr.bf16.mxu0 %v543
    %943 = vmatpush1.bf16.msra.mxu0 %v542
    %944 = vmatprep.subr.bf16.mxu0 %v547
    %945 = vmatpush1.bf16.msra.mxu0 %v546
    %946 = vmatprep.subr.bf16.mxu0 %v551
    %947 = vmatpush1.bf16.msra.mxu0 %v550
    %948 = vmatprep.subr.bf16.mxu0 %v555
    %949 = vmatpush1.bf16.msra.mxu0 %v554
    %950 = vmatprep.subr.bf16.mxu0 %v559
    %951 = vmatpush1.bf16.msra.mxu0 %v558
    %952 = vmatprep.subr.bf16.mxu0 %v563
    %953 = vmatpush1.bf16.msra.mxu0 %v562
    %954 = vmatprep.subr.bf16.mxu0 %v567
    %955 = vmatpush1.bf16.msra.mxu0 %v566
    %956 = vmatprep.subr.bf16.mxu0 %v571
    %957 = vmatpush1.bf16.msra.mxu0 %v570
    %958 = vmatprep.subr.bf16.mxu0 0
    %959 = vmatpush1.bf16.msra.mxu0 0
    %960 = vmatprep.subr.bf16.mxu0 0
    %961 = vmatpush1.bf16.msra.mxu0 0
    %962 = vmatprep.subr.bf16.mxu0 0
    %963 = vmatpush1.bf16.msra.mxu0 0
    %964 = vmatprep.subr.bf16.mxu0 0
    %965 = vmatpush1.bf16.msra.mxu0 0
    %966 = vmatprep.subr.bf16.mxu0 0
    %967 = vmatpush1.bf16.msra.mxu0 0
    %968 = vmatprep.subr.bf16.mxu0 0
    %969 = vmatpush1.bf16.msra.mxu0 0
    %970 = vmatprep.subr.bf16.mxu0 0
    %971 = vmatpush1.bf16.msra.mxu0 0
    %972 = vmatprep.subr.bf16.mxu0 0
    %973 = vmatpush1.bf16.msra.mxu0 0
    %974 = vmatprep.mubr.bf16.mxu0 0
    %975 = vmatmul.mubr.bf16.gmra.mrb[0].mxu0 %v941
    %v976 = vpop.f32.mrb[0].mxu0
    %v977 = vadd.f32 0.0, %v976
    %v978 = vpop.f32.mrb[0].mxu0
    %v979 = vadd.f32 0.0, %v978
    %v980 = vpop.f32.mrb[0].mxu0
    %v981 = vpop.f32.mrb[0].mxu0
    %982 = vdwg.mxu0
    %983 = vmatprep.subr.bf16.mxu0 %v545
    %984 = vmatpush1.bf16.msra.mxu0 %v544
    %985 = vmatprep.subr.bf16.mxu0 %v549
    %986 = vmatpush1.bf16.msra.mxu0 %v548
    %987 = vmatprep.subr.bf16.mxu0 %v553
    %988 = vmatpush1.bf16.msra.mxu0 %v552
    %989 = vmatprep.subr.bf16.mxu0 %v557
    %990 = vmatpush1.bf16.msra.mxu0 %v556
    %991 = vmatprep.subr.bf16.mxu0 %v561
    %992 = vmatpush1.bf16.msra.mxu0 %v560
    %993 = vmatprep.subr.bf16.mxu0 %v565
    %994 = vmatpush1.bf16.msra.mxu0 %v564
    %995 = vmatprep.subr.bf16.mxu0 %v569
    %996 = vmatpush1.bf16.msra.mxu0 %v568
    %997 = vmatprep.subr.bf16.mxu0 %v573
    %998 = vmatpush1.bf16.msra.mxu0 %v572
    %999 = vmatprep.subr.bf16.mxu0 0
    %1000 = vmatpush1.bf16.msra.mxu0 0
    %1001 = vmatprep.subr.bf16.mxu0 0
    %1002 = vmatpush1.bf16.msra.mxu0 0
    %1003 = vmatprep.subr.bf16.mxu0 0
    %1004 = vmatpush1.bf16.msra.mxu0 0
    %1005 = vmatprep.subr.bf16.mxu0 0
    %1006 = vmatpush1.bf16.msra.mxu0 0
    %1007 = vmatprep.subr.bf16.mxu0 0
    %1008 = vmatpush1.bf16.msra.mxu0 0
    %1009 = vmatprep.subr.bf16.mxu0 0
    %1010 = vmatpush1.bf16.msra.mxu0 0
    %1011 = vmatprep.subr.bf16.mxu0 0
    %1012 = vmatpush1.bf16.msra.mxu0 0
    %1013 = vmatprep.subr.bf16.mxu0 0
    %1014 = vmatpush1.bf16.msra.mxu0 0
    %1015 = vmatprep.mubr.bf16.mxu0 0
    %1016 = vmatmul.mubr.bf16.gmra.mrb[0].mxu0 %v941
    %v1017 = vpop.f32.mrb[0].mxu0
    %v1018 = vadd.f32 0.0, %v1017
    %v1019 = vpop.f32.mrb[0].mxu0
    %v1020 = vadd.f32 0.0, %v1019
    %v1021 = vpop.f32.mrb[0].mxu0
    %v1022 = vpop.f32.mrb[0].mxu0
    %1023 = vdwg.mxu0
    %v1024 = vadd.f32 %v937, %v977
    %v1025 = vadd.f32 %v938, %v979
    %v1026 = vadd.f32 %v939, %v1018
    %v1027 = vadd.f32 %v940, %v1020
    %v1028 = vmul.f32 %v1024, 0.5
    %v1029 = vtanh.pop %v1028
    %v1030 = vmul.f32 %v1029, 0.5
    %v1031 = vadd.f32 %v1030, 0.5
    %v1032 = vmul.f32 %v1025, 0.5
    %v1033 = vtanh.pop %v1032
    %v1034 = vmul.f32 %v1033, 0.5
    %v1035 = vadd.f32 %v1034, 0.5
    %v1036 = vtanh.pop %v1026
    %v1037 = vmul.f32 %v1027, 0.5
    %v1038 = vtanh.pop %v1037
    %v1039 = vmul.f32 %v1038, 0.5
    %v1040 = vadd.f32 %v1039, 0.5
    %v1041 = vmul.f32 %v1035, %v931
    %v1042 = vmul.f32 %v1031, %v1036
    %v1043 = vadd.f32 %v1041, %v1042
    %v1044 = vtanh.pop %v1043
    %v1045 = vmul.f32 %v1040, %v1044
    %s1046 = smul.u32 4, 4
    %s1047 = smul.addr %s1046, 8
    %s1048 = scalar_lea.vmem [#allocation2], %s1047
    %v1049 = vld [vmem:[%s1048] sm:$0xff]
    %v1050 = vld [vmem:[%s1048 + $0x8] sm:$0xff]
    %v1051 = vld [vmem:[%s1048 + $0x10] sm:$0xff]
    %v1052 = vld [vmem:[%s1048 + $0x18] sm:$0xff]
    %v1053 = vpack.c.bf16 %v1045, %v1045
    %1054 = vmatprep.subr.bf16.mxu0 %v543
    %1055 = vmatpush1.bf16.msra.mxu0 %v542
    %1056 = vmatprep.subr.bf16.mxu0 %v547
    %1057 = vmatpush1.bf16.msra.mxu0 %v546
    %1058 = vmatprep.subr.bf16.mxu0 %v551
    %1059 = vmatpush1.bf16.msra.mxu0 %v550
    %1060 = vmatprep.subr.bf16.mxu0 %v555
    %1061 = vmatpush1.bf16.msra.mxu0 %v554
    %1062 = vmatprep.subr.bf16.mxu0 %v559
    %1063 = vmatpush1.bf16.msra.mxu0 %v558
    %1064 = vmatprep.subr.bf16.mxu0 %v563
    %1065 = vmatpush1.bf16.msra.mxu0 %v562
    %1066 = vmatprep.subr.bf16.mxu0 %v567
    %1067 = vmatpush1.bf16.msra.mxu0 %v566
    %1068 = vmatprep.subr.bf16.mxu0 %v571
    %1069 = vmatpush1.bf16.msra.mxu0 %v570
    %1070 = vmatprep.subr.bf16.mxu0 0
    %1071 = vmatpush1.bf16.msra.mxu0 0
    %1072 = vmatprep.subr.bf16.mxu0 0
    %1073 = vmatpush1.bf16.msra.mxu0 0
    %1074 = vmatprep.subr.bf16.mxu0 0
    %1075 = vmatpush1.bf16.msra.mxu0 0
    %1076 = vmatprep.subr.bf16.mxu0 0
    %1077 = vmatpush1.bf16.msra.mxu0 0
    %1078 = vmatprep.subr.bf16.mxu0 0
    %1079 = vmatpush1.bf16.msra.mxu0 0
    %1080 = vmatprep.subr.bf16.mxu0 0
    %1081 = vmatpush1.bf16.msra.mxu0 0
    %1082 = vmatprep.subr.bf16.mxu0 0
    %1083 = vmatpush1.bf16.msra.mxu0 0
    %1084 = vmatprep.subr.bf16.mxu0 0
    %1085 = vmatpush1.bf16.msra.mxu0 0
    %1086 = vmatprep.mubr.bf16.mxu0 0
    %1087 = vmatmul.mubr.bf16.gmra.mrb[0].mxu0 %v1053
    %v1088 = vpop.f32.mrb[0].mxu0
    %v1089 = vadd.f32 0.0, %v1088
    %v1090 = vpop.f32.mrb[0].mxu0
    %v1091 = vadd.f32 0.0, %v1090
    %v1092 = vpop.f32.mrb[0].mxu0
    %v1093 = vpop.f32.mrb[0].mxu0
    %1094 = vdwg.mxu0
    %1095 = vmatprep.subr.bf16.mxu0 %v545
    %1096 = vmatpush1.bf16.msra.mxu0 %v544
    %1097 = vmatprep.subr.bf16.mxu0 %v549
    %1098 = vmatpush1.bf16.msra.mxu0 %v548
    %1099 = vmatprep.subr.bf16.mxu0 %v553
    %1100 = vmatpush1.bf16.msra.mxu0 %v552
    %1101 = vmatprep.subr.bf16.mxu0 %v557
    %1102 = vmatpush1.bf16.msra.mxu0 %v556
    %1103 = vmatprep.subr.bf16.mxu0 %v561
    %1104 = vmatpush1.bf16.msra.mxu0 %v560
    %1105 = vmatprep.subr.bf16.mxu0 %v565
    %1106 = vmatpush1.bf16.msra.mxu0 %v564
    %1107 = vmatprep.subr.bf16.mxu0 %v569
    %1108 = vmatpush1.bf16.msra.mxu0 %v568
    %1109 = vmatprep.subr.bf16.mxu0 %v573
    %1110 = vmatpush1.bf16.msra.mxu0 %v572
    %1111 = vmatprep.subr.bf16.mxu0 0
    %1112 = vmatpush1.bf16.msra.mxu0 0
    %1113 = vmatprep.subr.bf16.mxu0 0
    %1114 = vmatpush1.bf16.msra.mxu0 0
    %1115 = vmatprep.subr.bf16.mxu0 0
    %1116 = vmatpush1.bf16.msra.mxu0 0
    %1117 = vmatprep.subr.bf16.mxu0 0
    %1118 = vmatpush1.bf16.msra.mxu0 0
    %1119 = vmatprep.subr.bf16.mxu0 0
    %1120 = vmatpush1.bf16.msra.mxu0 0
    %1121 = vmatprep.subr.bf16.mxu0 0
    %1122 = vmatpush1.bf16.msra.mxu0 0
    %1123 = vmatprep.subr.bf16.mxu0 0
    %1124 = vmatpush1.bf16.msra.mxu0 0
    %1125 = vmatprep.subr.bf16.mxu0 0
    %1126 = vmatpush1.bf16.msra.mxu0 0
    %1127 = vmatprep.mubr.bf16.mxu0 0
    %1128 = vmatmul.mubr.bf16.gmra.mrb[0].mxu0 %v1053
    %v1129 = vpop.f32.mrb[0].mxu0
    %v1130 = vadd.f32 0.0, %v1129
    %v1131 = vpop.f32.mrb[0].mxu0
    %v1132 = vadd.f32 0.0, %v1131
    %v1133 = vpop.f32.mrb[0].mxu0
    %v1134 = vpop.f32.mrb[0].mxu0
    %1135 = vdwg.mxu0
    %v1136 = vadd.f32 %v1049, %v1089
    %v1137 = vadd.f32 %v1050, %v1091
    %v1138 = vadd.f32 %v1051, %v1130
    %v1139 = vadd.f32 %v1052, %v1132
    %v1140 = vmul.f32 %v1136, 0.5
    %v1141 = vtanh.pop %v1140
    %v1142 = vmul.f32 %v1141, 0.5
    %v1143 = vadd.f32 %v1142, 0.5
    %v1144 = vmul.f32 %v1137, 0.5
    %v1145 = vtanh.pop %v1144
    %v1146 = vmul.f32 %v1145, 0.5
    %v1147 = vadd.f32 %v1146, 0.5
    %v1148 = vtanh.pop %v1138
    %v1149 = vmul.f32 %v1139, 0.5
    %v1150 = vtanh.pop %v1149
    %v1151 = vmul.f32 %v1150, 0.5
    %v1152 = vadd.f32 %v1151, 0.5
    %v1153 = vmul.f32 %v1147, %v1043
    %v1154 = vmul.f32 %v1143, %v1148
    %v1155 = vadd.f32 %v1153, %v1154
    %v1156 = vtanh.pop %v1155
    %v1157 = vmul.f32 %v1152, %v1156
    %s1158 = smul.u32 5, 4
    %s1159 = smul.addr %s1158, 8
    %s1160 = scalar_lea.vmem [#allocation2], %s1159
    %v1161 = vld [vmem:[%s1160] sm:$0xff]
    %v1162 = vld [vmem:[%s1160 + $0x8] sm:$0xff]
    %v1163 = vld [vmem:[%s1160 + $0x10] sm:$0xff]
    %v1164 = vld [vmem:[%s1160 + $0x18] sm:$0xff]
    %v1165 = vpack.c.bf16 %v1157, %v1157
    %1166 = vmatprep.subr.bf16.mxu0 %v543
    %1167 = vmatpush1.bf16.msra.mxu0 %v542
    %1168 = vmatprep.subr.bf16.mxu0 %v547
    %1169 = vmatpush1.bf16.msra.mxu0 %v546
    %1170 = vmatprep.subr.bf16.mxu0 %v551
    %1171 = vmatpush1.bf16.msra.mxu0 %v550
    %1172 = vmatprep.subr.bf16.mxu0 %v555
    %1173 = vmatpush1.bf16.msra.mxu0 %v554
    %1174 = vmatprep.subr.bf16.mxu0 %v559
    %1175 = vmatpush1.bf16.msra.mxu0 %v558
    %1176 = vmatprep.subr.bf16.mxu0 %v563
    %1177 = vmatpush1.bf16.msra.mxu0 %v562
    %1178 = vmatprep.subr.bf16.mxu0 %v567
    %1179 = vmatpush1.bf16.msra.mxu0 %v566
    %1180 = vmatprep.subr.bf16.mxu0 %v571
    %1181 = vmatpush1.bf16.msra.mxu0 %v570
    %1182 = vmatprep.subr.bf16.mxu0 0
    %1183 = vmatpush1.bf16.msra.mxu0 0
    %1184 = vmatprep.subr.bf16.mxu0 0
    %1185 = vmatpush1.bf16.msra.mxu0 0
    %1186 = vmatprep.subr.bf16.mxu0 0
    %1187 = vmatpush1.bf16.msra.mxu0 0
    %1188 = vmatprep.subr.bf16.mxu0 0
    %1189 = vmatpush1.bf16.msra.mxu0 0
    %1190 = vmatprep.subr.bf16.mxu0 0
    %1191 = vmatpush1.bf16.msra.mxu0 0
    %1192 = vmatprep.subr.bf16.mxu0 0
    %1193 = vmatpush1.bf16.msra.mxu0 0
    %1194 = vmatprep.subr.bf16.mxu0 0
    %1195 = vmatpush1.bf16.msra.mxu0 0
    %1196 = vmatprep.subr.bf16.mxu0 0
    %1197 = vmatpush1.bf16.msra.mxu0 0
    %1198 = vmatprep.mubr.bf16.mxu0 0
    %1199 = vmatmul.mubr.bf16.gmra.mrb[0].mxu0 %v1165
    %v1200 = vpop.f32.mrb[0].mxu0
    %v1201 = vadd.f32 0.0, %v1200
    %v1202 = vpop.f32.mrb[0].mxu0
    %v1203 = vadd.f32 0.0, %v1202
    %v1204 = vpop.f32.mrb[0].mxu0
    %v1205 = vpop.f32.mrb[0].mxu0
    %1206 = vdwg.mxu0
    %1207 = vmatprep.subr.bf16.mxu0 %v545
    %1208 = vmatpush1.bf16.msra.mxu0 %v544
    %1209 = vmatprep.subr.bf16.mxu0 %v549
    %1210 = vmatpush1.bf16.msra.mxu0 %v548
    %1211 = vmatprep.subr.bf16.mxu0 %v553
    %1212 = vmatpush1.bf16.msra.mxu0 %v552
    %1213 = vmatprep.subr.bf16.mxu0 %v557
    %1214 = vmatpush1.bf16.msra.mxu0 %v556
    %1215 = vmatprep.subr.bf16.mxu0 %v561
    %1216 = vmatpush1.bf16.msra.mxu0 %v560
    %1217 = vmatprep.subr.bf16.mxu0 %v565
    %1218 = vmatpush1.bf16.msra.mxu0 %v564
    %1219 = vmatprep.subr.bf16.mxu0 %v569
    %1220 = vmatpush1.bf16.msra.mxu0 %v568
    %1221 = vmatprep.subr.bf16.mxu0 %v573
    %1222 = vmatpush1.bf16.msra.mxu0 %v572
    %1223 = vmatprep.subr.bf16.mxu0 0
    %1224 = vmatpush1.bf16.msra.mxu0 0
    %1225 = vmatprep.subr.bf16.mxu0 0
    %1226 = vmatpush1.bf16.msra.mxu0 0
    %1227 = vmatprep.subr.bf16.mxu0 0
    %1228 = vmatpush1.bf16.msra.mxu0 0
    %1229 = vmatprep.subr.bf16.mxu0 0
    %1230 = vmatpush1.bf16.msra.mxu0 0
    %1231 = vmatprep.subr.bf16.mxu0 0
    %1232 = vmatpush1.bf16.msra.mxu0 0
    %1233 = vmatprep.subr.bf16.mxu0 0
    %1234 = vmatpush1.bf16.msra.mxu0 0
    %1235 = vmatprep.subr.bf16.mxu0 0
    %1236 = vmatpush1.bf16.msra.mxu0 0
    %1237 = vmatprep.subr.bf16.mxu0 0
    %1238 = vmatpush1.bf16.msra.mxu0 0
    %1239 = vmatprep.mubr.bf16.mxu0 0
    %1240 = vmatmul.mubr.bf16.gmra.mrb[0].mxu0 %v1165
    %v1241 = vpop.f32.mrb[0].mxu0
    %v1242 = vadd.f32 0.0, %v1241
    %v1243 = vpop.f32.mrb[0].mxu0
    %v1244 = vadd.f32 0.0, %v1243
    %v1245 = vpop.f32.mrb[0].mxu0
    %v1246 = vpop.f32.mrb[0].mxu0
    %1247 = vdwg.mxu0
    %v1248 = vadd.f32 %v1161, %v1201
    %v1249 = vadd.f32 %v1162, %v1203
    %v1250 = vadd.f32 %v1163, %v1242
    %v1251 = vadd.f32 %v1164, %v1244
    %v1252 = vmul.f32 %v1248, 0.5
    %v1253 = vtanh.pop %v1252
    %v1254 = vmul.f32 %v1253, 0.5
    %v1255 = vadd.f32 %v1254, 0.5
    %v1256 = vmul.f32 %v1249, 0.5
    %v1257 = vtanh.pop %v1256
    %v1258 = vmul.f32 %v1257, 0.5
    %v1259 = vadd.f32 %v1258, 0.5
    %v1260 = vtanh.pop %v1250
    %v1261 = vmul.f32 %v1251, 0.5
    %v1262 = vtanh.pop %v1261
    %v1263 = vmul.f32 %v1262, 0.5
    %v1264 = vadd.f32 %v1263, 0.5
    %v1265 = vmul.f32 %v1259, %v1155
    %v1266 = vmul.f32 %v1255, %v1260
    %v1267 = vadd.f32 %v1265, %v1266
    %v1268 = vtanh.pop %v1267
    %v1269 = vmul.f32 %v1264, %v1268
    %s1270 = smul.u32 6, 4
    %s1271 = smul.addr %s1270, 8
    %s1272 = scalar_lea.vmem [#allocation2], %s1271
    %v1273 = vld [vmem:[%s1272] sm:$0xff]
    %v1274 = vld [vmem:[%s1272 + $0x8] sm:$0xff]
    %v1275 = vld [vmem:[%s1272 + $0x10] sm:$0xff]
    %v1276 = vld [vmem:[%s1272 + $0x18] sm:$0xff]
    %v1277 = vpack.c.bf16 %v1269, %v1269
    %1278 = vmatprep.subr.bf16.mxu0 %v543
    %1279 = vmatpush1.bf16.msra.mxu0 %v542
    %1280 = vmatprep.subr.bf16.mxu0 %v547
    %1281 = vmatpush1.bf16.msra.mxu0 %v546
    %1282 = vmatprep.subr.bf16.mxu0 %v551
    %1283 = vmatpush1.bf16.msra.mxu0 %v550
    %1284 = vmatprep.subr.bf16.mxu0 %v555
    %1285 = vmatpush1.bf16.msra.mxu0 %v554
    %1286 = vmatprep.subr.bf16.mxu0 %v559
    %1287 = vmatpush1.bf16.msra.mxu0 %v558
    %1288 = vmatprep.subr.bf16.mxu0 %v563
    %1289 = vmatpush1.bf16.msra.mxu0 %v562
    %1290 = vmatprep.subr.bf16.mxu0 %v567
    %1291 = vmatpush1.bf16.msra.mxu0 %v566
    %1292 = vmatprep.subr.bf16.mxu0 %v571
    %1293 = vmatpush1.bf16.msra.mxu0 %v570
    %1294 = vmatprep.subr.bf16.mxu0 0
    %1295 = vmatpush1.bf16.msra.mxu0 0
    %1296 = vmatprep.subr.bf16.mxu0 0
    %1297 = vmatpush1.bf16.msra.mxu0 0
    %1298 = vmatprep.subr.bf16.mxu0 0
    %1299 = vmatpush1.bf16.msra.mxu0 0
    %1300 = vmatprep.subr.bf16.mxu0 0
    %1301 = vmatpush1.bf16.msra.mxu0 0
    %1302 = vmatprep.subr.bf16.mxu0 0
    %1303 = vmatpush1.bf16.msra.mxu0 0
    %1304 = vmatprep.subr.bf16.mxu0 0
    %1305 = vmatpush1.bf16.msra.mxu0 0
    %1306 = vmatprep.subr.bf16.mxu0 0
    %1307 = vmatpush1.bf16.msra.mxu0 0
    %1308 = vmatprep.subr.bf16.mxu0 0
    %1309 = vmatpush1.bf16.msra.mxu0 0
    %1310 = vmatprep.mubr.bf16.mxu0 0
    %1311 = vmatmul.mubr.bf16.gmra.mrb[0].mxu0 %v1277
    %v1312 = vpop.f32.mrb[0].mxu0
    %v1313 = vadd.f32 0.0, %v1312
    %v1314 = vpop.f32.mrb[0].mxu0
    %v1315 = vadd.f32 0.0, %v1314
    %v1316 = vpop.f32.mrb[0].mxu0
    %v1317 = vpop.f32.mrb[0].mxu0
    %1318 = vdwg.mxu0
    %1319 = vmatprep.subr.bf16.mxu0 %v545
    %1320 = vmatpush1.bf16.msra.mxu0 %v544
    %1321 = vmatprep.subr.bf16.mxu0 %v549
    %1322 = vmatpush1.bf16.msra.mxu0 %v548
    %1323 = vmatprep.subr.bf16.mxu0 %v553
    %1324 = vmatpush1.bf16.msra.mxu0 %v552
    %1325 = vmatprep.subr.bf16.mxu0 %v557
    %1326 = vmatpush1.bf16.msra.mxu0 %v556
    %1327 = vmatprep.subr.bf16.mxu0 %v561
    %1328 = vmatpush1.bf16.msra.mxu0 %v560
    %1329 = vmatprep.subr.bf16.mxu0 %v565
    %1330 = vmatpush1.bf16.msra.mxu0 %v564
    %1331 = vmatprep.subr.bf16.mxu0 %v569
    %1332 = vmatpush1.bf16.msra.mxu0 %v568
    %1333 = vmatprep.subr.bf16.mxu0 %v573
    %1334 = vmatpush1.bf16.msra.mxu0 %v572
    %1335 = vmatprep.subr.bf16.mxu0 0
    %1336 = vmatpush1.bf16.msra.mxu0 0
    %1337 = vmatprep.subr.bf16.mxu0 0
    %1338 = vmatpush1.bf16.msra.mxu0 0
    %1339 = vmatprep.subr.bf16.mxu0 0
    %1340 = vmatpush1.bf16.msra.mxu0 0
    %1341 = vmatprep.subr.bf16.mxu0 0
    %1342 = vmatpush1.bf16.msra.mxu0 0
    %1343 = vmatprep.subr.bf16.mxu0 0
    %1344 = vmatpush1.bf16.msra.mxu0 0
    %1345 = vmatprep.subr.bf16.mxu0 0
    %1346 = vmatpush1.bf16.msra.mxu0 0
    %1347 = vmatprep.subr.bf16.mxu0 0
    %1348 = vmatpush1.bf16.msra.mxu0 0
    %1349 = vmatprep.subr.bf16.mxu0 0
    %1350 = vmatpush1.bf16.msra.mxu0 0
    %1351 = vmatprep.mubr.bf16.mxu0 0
    %1352 = vmatmul.mubr.bf16.gmra.mrb[0].mxu0 %v1277
    %v1353 = vpop.f32.mrb[0].mxu0
    %v1354 = vadd.f32 0.0, %v1353
    %v1355 = vpop.f32.mrb[0].mxu0
    %v1356 = vadd.f32 0.0, %v1355
    %v1357 = vpop.f32.mrb[0].mxu0
    %v1358 = vpop.f32.mrb[0].mxu0
    %1359 = vdwg.mxu0
    %v1360 = vadd.f32 %v1273, %v1313
    %v1361 = vadd.f32 %v1274, %v1315
    %v1362 = vadd.f32 %v1275, %v1354
    %v1363 = vadd.f32 %v1276, %v1356
    %v1364 = vmul.f32 %v1360, 0.5
    %v1365 = vtanh.pop %v1364
    %v1366 = vmul.f32 %v1365, 0.5
    %v1367 = vadd.f32 %v1366, 0.5
    %v1368 = vmul.f32 %v1361, 0.5
    %v1369 = vtanh.pop %v1368
    %v1370 = vmul.f32 %v1369, 0.5
    %v1371 = vadd.f32 %v1370, 0.5
    %v1372 = vtanh.pop %v1362
    %v1373 = vmul.f32 %v1363, 0.5
    %v1374 = vtanh.pop %v1373
    %v1375 = vmul.f32 %v1374, 0.5
    %v1376 = vadd.f32 %v1375, 0.5
    %v1377 = vmul.f32 %v1371, %v1267
    %v1378 = vmul.f32 %v1367, %v1372
    %v1379 = vadd.f32 %v1377, %v1378
    %v1380 = vtanh.pop %v1379
    %v1381 = vmul.f32 %v1376, %v1380
    %s1382 = smul.u32 7, 4
    %s1383 = smul.addr %s1382, 8
    %s1384 = scalar_lea.vmem [#allocation2], %s1383
    %v1385 = vld [vmem:[%s1384] sm:$0xff]
    %v1386 = vld [vmem:[%s1384 + $0x8] sm:$0xff]
    %v1387 = vld [vmem:[%s1384 + $0x10] sm:$0xff]
    %v1388 = vld [vmem:[%s1384 + $0x18] sm:$0xff]
    %v1389 = vpack.c.bf16 %v1381, %v1381
    %1390 = vmatprep.subr.bf16.mxu0 %v543
    %1391 = vmatpush1.bf16.msra.mxu0 %v542
    %1392 = vmatprep.subr.bf16.mxu0 %v547
    %1393 = vmatpush1.bf16.msra.mxu0 %v546
    %1394 = vmatprep.subr.bf16.mxu0 %v551
    %1395 = vmatpush1.bf16.msra.mxu0 %v550
    %1396 = vmatprep.subr.bf16.mxu0 %v555
    %1397 = vmatpush1.bf16.msra.mxu0 %v554
    %1398 = vmatprep.subr.bf16.mxu0 %v559
    %1399 = vmatpush1.bf16.msra.mxu0 %v558
    %1400 = vmatprep.subr.bf16.mxu0 %v563
    %1401 = vmatpush1.bf16.msra.mxu0 %v562
    %1402 = vmatprep.subr.bf16.mxu0 %v567
    %1403 = vmatpush1.bf16.msra.mxu0 %v566
    %1404 = vmatprep.subr.bf16.mxu0 %v571
    %1405 = vmatpush1.bf16.msra.mxu0 %v570
    %1406 = vmatprep.subr.bf16.mxu0 0
    %1407 = vmatpush1.bf16.msra.mxu0 0
    %1408 = vmatprep.subr.bf16.mxu0 0
    %1409 = vmatpush1.bf16.msra.mxu0 0
    %1410 = vmatprep.subr.bf16.mxu0 0
    %1411 = vmatpush1.bf16.msra.mxu0 0
    %1412 = vmatprep.subr.bf16.mxu0 0
    %1413 = vmatpush1.bf16.msra.mxu0 0
    %1414 = vmatprep.subr.bf16.mxu0 0
    %1415 = vmatpush1.bf16.msra.mxu0 0
    %1416 = vmatprep.subr.bf16.mxu0 0
    %1417 = vmatpush1.bf16.msra.mxu0 0
    %1418 = vmatprep.subr.bf16.mxu0 0
    %1419 = vmatpush1.bf16.msra.mxu0 0
    %1420 = vmatprep.subr.bf16.mxu0 0
    %1421 = vmatpush1.bf16.msra.mxu0 0
    %1422 = vmatprep.mubr.bf16.mxu0 0
    %1423 = vmatmul.mubr.bf16.gmra.mrb[0].mxu0 %v1389
    %v1424 = vpop.f32.mrb[0].mxu0
    %v1425 = vadd.f32 0.0, %v1424
    %v1426 = vpop.f32.mrb[0].mxu0
    %v1427 = vadd.f32 0.0, %v1426
    %v1428 = vpop.f32.mrb[0].mxu0
    %v1429 = vpop.f32.mrb[0].mxu0
    %1430 = vdwg.mxu0
    %1431 = vmatprep.subr.bf16.mxu0 %v545
    %1432 = vmatpush1.bf16.msra.mxu0 %v544
    %1433 = vmatprep.subr.bf16.mxu0 %v549
    %1434 = vmatpush1.bf16.msra.mxu0 %v548
    %1435 = vmatprep.subr.bf16.mxu0 %v553
    %1436 = vmatpush1.bf16.msra.mxu0 %v552
    %1437 = vmatprep.subr.bf16.mxu0 %v557
    %1438 = vmatpush1.bf16.msra.mxu0 %v556
    %1439 = vmatprep.subr.bf16.mxu0 %v561
    %1440 = vmatpush1.bf16.msra.mxu0 %v560
    %1441 = vmatprep.subr.bf16.mxu0 %v565
    %1442 = vmatpush1.bf16.msra.mxu0 %v564
    %1443 = vmatprep.subr.bf16.mxu0 %v569
    %1444 = vmatpush1.bf16.msra.mxu0 %v568
    %1445 = vmatprep.subr.bf16.mxu0 %v573
    %1446 = vmatpush1.bf16.msra.mxu0 %v572
    %1447 = vmatprep.subr.bf16.mxu0 0
    %1448 = vmatpush1.bf16.msra.mxu0 0
    %1449 = vmatprep.subr.bf16.mxu0 0
    %1450 = vmatpush1.bf16.msra.mxu0 0
    %1451 = vmatprep.subr.bf16.mxu0 0
    %1452 = vmatpush1.bf16.msra.mxu0 0
    %1453 = vmatprep.subr.bf16.mxu0 0
    %1454 = vmatpush1.bf16.msra.mxu0 0
    %1455 = vmatprep.subr.bf16.mxu0 0
    %1456 = vmatpush1.bf16.msra.mxu0 0
    %1457 = vmatprep.subr.bf16.mxu0 0
    %1458 = vmatpush1.bf16.msra.mxu0 0
    %1459 = vmatprep.subr.bf16.mxu0 0
    %1460 = vmatpush1.bf16.msra.mxu0 0
    %1461 = vmatprep.subr.bf16.mxu0 0
    %1462 = vmatpush1.bf16.msra.mxu0 0
    %1463 = vmatprep.mubr.bf16.mxu0 0
    %1464 = vmatmul.mubr.bf16.gmra.mrb[0].mxu0 %v1389
    %v1465 = vpop.f32.mrb[0].mxu0
    %v1466 = vadd.f32 0.0, %v1465
    %v1467 = vpop.f32.mrb[0].mxu0
    %v1468 = vadd.f32 0.0, %v1467
    %v1469 = vpop.f32.mrb[0].mxu0
    %v1470 = vpop.f32.mrb[0].mxu0
    %1471 = vdwg.mxu0
    %v1472 = vadd.f32 %v1385, %v1425
    %v1473 = vadd.f32 %v1386, %v1427
    %v1474 = vadd.f32 %v1387, %v1466
    %v1475 = vadd.f32 %v1388, %v1468
    %v1476 = vmul.f32 %v1472, 0.5
    %v1477 = vtanh.pop %v1476
    %v1478 = vmul.f32 %v1477, 0.5
    %v1479 = vadd.f32 %v1478, 0.5
    %v1480 = vmul.f32 %v1473, 0.5
    %v1481 = vtanh.pop %v1480
    %v1482 = vmul.f32 %v1481, 0.5
    %v1483 = vadd.f32 %v1482, 0.5
    %v1484 = vtanh.pop %v1474
    %v1485 = vmul.f32 %v1475, 0.5
    %v1486 = vtanh.pop %v1485
    %v1487 = vmul.f32 %v1486, 0.5
    %v1488 = vadd.f32 %v1487, 0.5
    %v1489 = vmul.f32 %v1483, %v1379
    %v1490 = vmul.f32 %v1479, %v1484
    %v1491 = vadd.f32 %v1489, %v1490
    %v1492 = vtanh.pop %v1491
    %v1493 = vmul.f32 %v1488, %v1492
    %v1494 = vpack.c.bf16 %v1493, %v1493
    %v1495 = vld [vmem:[%s3] sm:$0xf]
    %v1496 = vld [vmem:[%s3 + $0x4] sm:$0xf]
    %v1497 = vld [vmem:[%s3 + $0x8] sm:$0xf]
    %v1498 = vld [vmem:[%s3 + $0xc] sm:$0xf]
    %v1499 = vld [vmem:[%s3 + $0x10] sm:$0xf]
    %v1500 = vld [vmem:[%s3 + $0x14] sm:$0xf]
    %v1501 = vld [vmem:[%s3 + $0x18] sm:$0xf]
    %v1502 = vld [vmem:[%s3 + $0x1c] sm:$0xf]
    %v1503 = vld [vmem:[%s3 + $0x20] sm:$0xf]
    %v1504 = vld [vmem:[%s3 + $0x24] sm:$0xf]
    %v1505 = vld [vmem:[%s3 + $0x28] sm:$0xf]
    %v1506 = vld [vmem:[%s3 + $0x2c] sm:$0xf]
    %v1507 = vld [vmem:[%s3 + $0x30] sm:$0xf]
    %v1508 = vld [vmem:[%s3 + $0x34] sm:$0xf]
    %v1509 = vld [vmem:[%s3 + $0x38] sm:$0xf]
    %v1510 = vld [vmem:[%s3 + $0x3c] sm:$0xf]
    %v1511 = vld [vmem:[%s4] sm:$0x1]
    %v1513 = vlaneseq
    %v1514 = vshrl.u32 %v1513, 7
    %v1515 = vsub.s32 0, %v1514
    %v1516 = vrot.slane %v1511, %v1515
    %v1534 = vunpack.c.l.b16 %v1495
    %v1535 = vunpack.c.l.b16 %v1496
    %v1536 = vunpack.c.l.b16 %v1497
    %v1537 = vunpack.c.l.b16 %v1498
    %v1538 = vunpack.c.l.b16 %v1499
    %v1539 = vunpack.c.l.b16 %v1500
    %v1540 = vunpack.c.l.b16 %v1501
    %v1541 = vunpack.c.l.b16 %v1502
    %v1542 = vunpack.c.l.b16 %v1503
    %v1543 = vunpack.c.l.b16 %v1504
    %v1544 = vunpack.c.l.b16 %v1505
    %v1545 = vunpack.c.l.b16 %v1506
    %v1546 = vunpack.c.l.b16 %v1507
    %v1547 = vunpack.c.l.b16 %v1508
    %v1548 = vunpack.c.l.b16 %v1509
    %v1549 = vunpack.c.l.b16 %v1510
    %v1550 = vpack.c.b16 %v1535, %v1534
    %v1551 = vpack.c.b16 %v1537, %v1536
    %v1552 = vpack.c.b16 %v1539, %v1538
    %v1553 = vpack.c.b16 %v1541, %v1540
    %v1554 = vpack.c.b16 %v1543, %v1542
    %v1555 = vpack.c.b16 %v1545, %v1544
    %v1556 = vpack.c.b16 %v1547, %v1546
    %v1557 = vpack.c.b16 %v1549, %v1548
    %1566 = vmatprep.subr.bf16.mxu0 0
    %1567 = vmatpush1.bf16.msra.mxu0 %v1550
    %1568 = vmatprep.subr.bf16.mxu0 0
    %1569 = vmatpush1.bf16.msra.mxu0 %v1551
    %1570 = vmatprep.subr.bf16.mxu0 0
    %1571 = vmatpush1.bf16.msra.mxu0 %v1552
    %1572 = vmatprep.subr.bf16.mxu0 0
    %1573 = vmatpush1.bf16.msra.mxu0 %v1553
    %1574 = vmatprep.subr.bf16.mxu0 0
    %1575 = vmatpush1.bf16.msra.mxu0 %v1554
    %1576 = vmatprep.subr.bf16.mxu0 0
    %1577 = vmatpush1.bf16.msra.mxu0 %v1555
    %1578 = vmatprep.subr.bf16.mxu0 0
    %1579 = vmatpush1.bf16.msra.mxu0 %v1556
    %1580 = vmatprep.subr.bf16.mxu0 0
    %1581 = vmatpush1.bf16.msra.mxu0 %v1557
    %1582 = vmatprep.subr.bf16.mxu0 0
    %1583 = vmatpush1.bf16.msra.mxu0 0
    %1584 = vmatprep.subr.bf16.mxu0 0
    %1585 = vmatpush1.bf16.msra.mxu0 0
    %1586 = vmatprep.subr.bf16.mxu0 0
    %1587 = vmatpush1.bf16.msra.mxu0 0
    %1588 = vmatprep.subr.bf16.mxu0 0
    %1589 = vmatpush1.bf16.msra.mxu0 0
    %1590 = vmatprep.subr.bf16.mxu0 0
    %1591 = vmatpush1.bf16.msra.mxu0 0
    %1592 = vmatprep.subr.bf16.mxu0 0
    %1593 = vmatpush1.bf16.msra.mxu0 0
    %1594 = vmatprep.subr.bf16.mxu0 0
    %1595 = vmatpush1.bf16.msra.mxu0 0
    %1596 = vmatprep.subr.bf16.mxu0 0
    %1597 = vmatpush1.bf16.msra.mxu0 0
    %1598 = vmatprep.mubr.bf16.mxu0 0
    %1599 = vmatmul.mubr.bf16.gmra.mrb[0].mxu0 %v1494
    %v1600 = vpop.f32.mrb[0].mxu0
    %v1601 = vadd.f32 %v1516, %v1600
    %v1602 = vpop.f32.mrb[0].mxu0
    %v1603 = vpop.f32.mrb[0].mxu0
    %v1604 = vpop.f32.mrb[0].mxu0
    %1605 = vdwg.mxu0
    %1606 = vst [vmem:[#allocation8] sm:$0xff] %v1601
    // Predicated region
    $region30: #{tpu_custom_call.1} parent=1 // pred_check
      _
    $region31: #{tpu_custom_call.1} parent=1 // pred_check_branch
      %1608 = sbr.rel (0) target = $region33
    $region32: #{tpu_custom_call.1} parent=1 // pred_region
      %s1610 = ssub.s32 128, 128
      %1611 = vsyncadd [#allocation5], %s1610
      %s1613 = sshll.u32 [#allocation8], 4
      %s1614 = int_to_ptr.vmem [resolvable:$true] %s1613
      %1616 = dma.vmem_to_hbm [thread:$0]  %s1614, 128, %s5, [#allocation5]
    $region33: #{tpu_custom_call.1} parent=1 // pred_fallthru
      _
    // Predicated region
    $region34: #{tpu_custom_call.1} parent=1 // pred_check
      _
    $region35: #{tpu_custom_call.1} parent=1 // pred_check_branch
      %1618 = sbr.rel (0) target = $region37
    $region36: #{tpu_custom_call.1} parent=1 // pred_region
      %1619 = dma.done [#allocation5], 128
    $region37: #{tpu_custom_call.1} parent=1 // pred_fallthru
      _
    %1620 = vsyncpa [#allocation4], 1
    %1621 = vsyncpa [#allocation7], 1
    %1622 = vsyncpa [#allocation5], 1

</llo_original>
